<compile_context>
chip_gen: v7x
topology: tpu7x:2x2x1
jax: 0.10.0
libtpu: 0.0.40
codegen_flags: <defaults>
</compile_context>

<pallas_src>
import jax
import jax.numpy as jnp
from jax import lax
from jax.experimental import pallas as pl
from jax.experimental.pallas import tpu as pltpu


def _pick_tile(n, cap=128):
    """Largest multiple of 8 that divides n and is <= cap (falls back to full n)."""
    t = min(cap, n)
    t -= t % 8
    while t >= 8:
        if n % t == 0:
            return t
        t -= 8
    return n  # ragged/tiny N: full extent (allowed when block dim == array dim)


def _make_sc_kernel(n_total, C):
    denom = max(n_total - 1, 1)  # unbiased std; guard N == 1 (torch.std -> NaN there)

    def kernel(xq_ref, xkv_ref, wq_ref, bq_ref, wk_ref, bk_ref, wv_ref, bv_ref,
               w1_ref, w2_ref, scal_ref, o_ref,
               q_scr, m_scr, l_scr, acc_scr, sum_scr, sq_scr):
        ki = pl.program_id(2)
        nk = pl.num_programs(2)

        # ----- init at the first KV step: project the resident query tile, zero scratch -----
        @pl.when(ki == 0)
        def _init():
            xq = xq_ref[0]                                                   # (TQ, C) f32
            q = jnp.dot(xq.astype(jnp.bfloat16), wq_ref[...].astype(jnp.bfloat16),
                        preferred_element_type=jnp.float32) + bq_ref[...]    # (TQ, C8)
            q_scr[...] = q.astype(jnp.bfloat16)
            m_scr[...] = jnp.full_like(m_scr, -jnp.inf)
            l_scr[...] = jnp.zeros_like(l_scr)
            acc_scr[...] = jnp.zeros_like(acc_scr)
            sum_scr[...] = jnp.zeros_like(sum_scr)
            sq_scr[...] = jnp.zeros_like(sq_scr)

        # ----- per-KV-tile work -----
        xkv = xkv_ref[0]                                                     # (TK, C) f32
        xkv_bf = xkv.astype(jnp.bfloat16)

        k = jnp.dot(xkv_bf, wk_ref[...].astype(jnp.bfloat16),
                    preferred_element_type=jnp.float32) + bk_ref[...]        # (TK, C8)
        v = jnp.dot(xkv_bf, wv_ref[...].astype(jnp.bfloat16),
                    preferred_element_type=jnp.float32) + bv_ref[...]        # (TK, C)

        # scores: q @ k^T without transposing k (contract last dims)
        s = lax.dot_general(q_scr[...], k.astype(jnp.bfloat16),
                            dimension_numbers=(((1,), (1,)), ((), ())),
                            preferred_element_type=jnp.float32)              # (TQ, TK)

        # online softmax (unnormalized accumulator; normalize once at the end)
        m_prev = m_scr[...]
        m_new = jnp.maximum(m_prev, jnp.max(s, axis=-1, keepdims=True))
        alpha = jnp.exp(m_prev - m_new)
        p = jnp.exp(s - m_new)                                               # (TQ, TK) f32
        l_scr[...] = alpha * l_scr[...] + jnp.sum(p, axis=-1, keepdims=True)
        acc_scr[...] = alpha * acc_scr[...] + jnp.dot(
            p.astype(jnp.bfloat16), v.astype(jnp.bfloat16),
            preferred_element_type=jnp.float32)                              # (TQ, C)
        m_scr[...] = m_new

        # channel-attn statistics accumulated over the same stream of x KV tiles
        sum_scr[...] = sum_scr[...] + jnp.sum(xkv, axis=0, keepdims=True)    # (1, C)
        sq_scr[...] = sq_scr[...] + jnp.sum(xkv * xkv, axis=0, keepdims=True)

        # ----- finalize at the last KV step -----
        @pl.when(ki == nk - 1)
        def _finalize():
            gamma = scal_ref[0]
            lamb = scal_ref[1]
            xq = xq_ref[0]                                                   # (TQ, C)

            mean = sum_scr[...] / n_total                                    # (1, C)
            var = (sq_scr[...] - n_total * mean * mean) / denom              # unbiased
            std = jnp.sqrt(jnp.maximum(var, 0.0))
            # fc: Linear(2C -> C//8, no bias) on concat(mean, std); split w1 (no lane concat)
            h = (jnp.dot(mean, w1_ref[0:C, :], preferred_element_type=jnp.float32)
                 + jnp.dot(std, w1_ref[C:2 * C, :], preferred_element_type=jnp.float32))
            h = jnp.maximum(h, 0.0)
            att = jax.nn.sigmoid(
                jnp.dot(h, w2_ref[...], preferred_element_type=jnp.float32))  # (1, C)

            inv_l = pl.reciprocal(l_scr[...], approx=True)                    # (TQ, 1)
            spatial = gamma * (acc_scr[...] * inv_l)
            o_ref[0] = spatial + lamb * att * xq + xq

    return kernel


def sc_module(x_nchw, params):
    B, C, H, W = x_nchw.shape
    assert C % 8 == 0 and C >= 8, "in_dim must be a positive multiple of 8"
    C8 = C // 8
    N = H * W

    # NCHW -> (B, N, C): channels on lanes, spatial on sublanes (fused under jit).
    # TODO(synk): for C < 128 the output is lane-sparse (masked vst); pad C to 128
    # in the wrapper for production channel counts.
    x = jnp.transpose(x_nchw.reshape(B, C, N), (0, 2, 1)).astype(jnp.float32)

    tq = _pick_tile(N, 128)
    tk = _pick_tile(N, 128)
    nq = N // tq
    nk = N // tk

    scal = jnp.concatenate([params["gamma"].reshape(-1),
                            params["lamb"].reshape(-1)]).astype(jnp.float32)  # (2,) in SMEM

    full = lambda shape: pl.BlockSpec(shape, lambda b, qi, ki: (0,) * len(shape))

    # Explicit VMEM budget from tile sizes (double-buffered blocks + weights + scratch),
    # with generous headroom; stays well within v5e/v6e/v7x limits.
    est = 4 * (2 * tq * C + 2 * tk * C + 2 * tq * C
               + 2 * (2 * C * C8 + 2 * C8 + C * C + C + 2 * C * C8 + C8 * C)
               + tq * C8 + 2 * tq + tq * C + 2 * C)
    vmem_limit = int(min(96 * 2**20, max(32 * 2**20, 8 * est)))

    kernel = _make_sc_kernel(N, C)

    out = pl.pallas_call(
        kernel,
        out_shape=jax.ShapeDtypeStruct((B, N, C), jnp.float32),
        grid_spec=pltpu.PrefetchScalarGridSpec(
            num_scalar_prefetch=0,
            grid=(B, nq, nk),
            in_specs=[
                pl.BlockSpec((1, tq, C), lambda b, qi, ki: (b, qi, 0)),  # x (query rows)
                pl.BlockSpec((1, tk, C), lambda b, qi, ki: (b, ki, 0)),  # x (KV rows)
                full((C, C8)),                                           # wq
                full((1, C8)),                                           # bq
                full((C, C8)),                                           # wk
                full((1, C8)),                                           # bk
                full((C, C)),                                            # wv
                full((1, C)),                                            # bv
                full((2 * C, C8)),                                       # w1 (fc1, no bias)
                full((C8, C)),                                           # w2 (fc2, no bias)
                pl.BlockSpec(memory_space=pltpu.MemorySpace.SMEM),       # [gamma, lamb]
            ],
            out_specs=pl.BlockSpec((1, tq, C), lambda b, qi, ki: (b, qi, 0)),
            scratch_shapes=[
                pltpu.VMEM((tq, C8), jnp.bfloat16),  # projected query tile (bf16 -> MXU)
                pltpu.VMEM((tq, 1), jnp.float32),    # running max
                pltpu.VMEM((tq, 1), jnp.float32),    # running softmax denom
                pltpu.VMEM((tq, C), jnp.float32),    # unnormalized output accumulator
                pltpu.VMEM((1, C), jnp.float32),     # sum(x) over N
                pltpu.VMEM((1, C), jnp.float32),     # sum(x^2) over N
            ],
        ),
        compiler_params=pltpu.CompilerParams(
            dimension_semantics=("parallel", "parallel", "arbitrary"),
            vmem_limit_bytes=vmem_limit,
        ),
    )(x, x, params["wq"], params["bq"], params["wk"], params["bk"],
      params["wv"], params["bv"], params["w1"], params["w2"], scal)

    return jnp.transpose(out, (0, 2, 1)).reshape(B, C, H, W)


def sc_module_reference(x_nchw, p):
    """Pure-JAX reference mirroring the PyTorch forward (NCHW, f32)."""
    B, C, H, W = x_nchw.shape
    N = H * W
    xn = x_nchw.reshape(B, C, N).astype(jnp.float32)

    # Self_Attn
    q = jnp.einsum("bcn,cd->bdn", xn, p["wq"]) + p["bq"][0][None, :, None]   # (B, C8, N)
    k = jnp.einsum("bcn,cd->bdn", xn, p["wk"]) + p["bk"][0][None, :, None]   # (B, C8, N)
    v = jnp.einsum("bcn,cd->bdn", xn, p["wv"]) + p["bv"][0][None, :, None]   # (B, C, N)
    energy = jnp.einsum("bdi,bdj->bij", q, k)                                # (B, N, N)
    attn = jax.nn.softmax(energy, axis=-1)
    spatial = p["gamma"][0, 0] * jnp.einsum("bcj,bij->bci", v, attn)         # (B, C, N)

    # Channel_Attn
    mean = jnp.mean(xn, axis=-1)                                             # (B, C)
    std = jnp.sqrt(jnp.sum((xn - mean[:, :, None]) ** 2, axis=-1) / (N - 1))  # unbiased
    feat = jnp.concatenate([mean, std], axis=1)                              # (B, 2C)
    h = jnp.maximum(feat @ p["w1"], 0.0)
    att = jax.nn.sigmoid(h @ p["w2"])                                        # (B, C)
    channel = p["lamb"][0, 0] * att[:, :, None] * xn

    out = spatial + channel + xn
    return out.reshape(B, C, H, W)


def init_params(key, C):
    C8 = C // 8
    ks = jax.random.split(key, 7)
    s = 0.1
    return {
        "wq": s * jax.random.normal(ks[0], (C, C8), jnp.float32),
        "bq": s * jax.random.normal(ks[1], (1, C8), jnp.float32),
        "wk": s * jax.random.normal(ks[2], (C, C8), jnp.float32),
        "bk": s * jax.random.normal(ks[3], (1, C8), jnp.float32),
        "wv": s * jax.random.normal(ks[4], (C, C), jnp.float32),
        "bv": s * jax.random.normal(ks[5], (1, C), jnp.float32),
        "w1": s * jax.random.normal(ks[6], (2 * C, C8), jnp.float32),
        "w2": s * jax.random.normal(jax.random.fold_in(key, 99), (C8, C), jnp.float32),
        "gamma": jnp.ones((1, 1), jnp.float32),   # nn.Parameter(torch.ones(1))
        "lamb": jnp.ones((1, 1), jnp.float32),    # nn.Parameter(torch.ones(1))
    }


if __name__ == "__main__":
    B, C, H, W = 2, 32, 16, 16          # N = 256 -> 2 query tiles x 2 KV tiles per batch
    key = jax.random.PRNGKey(0)
    kx, kp = jax.random.split(key)
    x = jax.random.normal(kx, (B, C, H, W), jnp.float32)
    params = init_params(kp, C)

    run = jax.jit(lambda xx: sc_module(xx, params))
    out = jax.block_until_ready(run(x))
    ref = jax.block_until_ready(sc_module_reference(x, params))

    assert out.shape == (B, C, H, W)
    err = float(jnp.max(jnp.abs(out - ref)))
    # bf16 MXU operands (f32 accumulation) vs the pure-f32 reference => looser tolerance.
    assert jnp.allclose(out, ref, rtol=2e-2, atol=2e-2), err
    print("KERNEL_OK")
</pallas_src>

<mosaic_0001>
module attributes {stable_mosaic.version = 11 : i64} {
  func.func @kernel(%arg0: i32, %arg1: i32, %arg2: i32, %arg3: memref<1x128x32xf32, #tpu.memory_space<vmem>>, %arg4: memref<1x128x32xf32, #tpu.memory_space<vmem>>, %arg5: memref<32x4xf32, #tpu.memory_space<vmem>>, %arg6: memref<1x4xf32, #tpu.memory_space<vmem>>, %arg7: memref<32x4xf32, #tpu.memory_space<vmem>>, %arg8: memref<1x4xf32, #tpu.memory_space<vmem>>, %arg9: memref<32x32xf32, #tpu.memory_space<vmem>>, %arg10: memref<1x32xf32, #tpu.memory_space<vmem>>, %arg11: memref<64x4xf32, #tpu.memory_space<vmem>>, %arg12: memref<4x32xf32, #tpu.memory_space<vmem>>, %arg13: memref<2xf32, #tpu.memory_space<smem>>, %arg14: memref<1x128x32xf32, #tpu.memory_space<vmem>>, %arg15: memref<128x4xbf16, #tpu.memory_space<vmem>>, %arg16: memref<128x1xf32, #tpu.memory_space<vmem>>, %arg17: memref<128x1xf32, #tpu.memory_space<vmem>>, %arg18: memref<128x32xf32, #tpu.memory_space<vmem>>, %arg19: memref<1x32xf32, #tpu.memory_space<vmem>>, %arg20: memref<1x32xf32, #tpu.memory_space<vmem>>) attributes {dimension_semantics = [#tpu.dimension_semantics<parallel>, #tpu.dimension_semantics<parallel>, #tpu.dimension_semantics<arbitrary>], iteration_bounds = array<i64: 2, 2, 2>, scalar_prefetch = 0 : i64, scratch_operands = 6 : i64, tpu.core_type = #tpu.core_type<tc>, window_params = [{transform_indices = @transform_0, window_bounds = array<i64: 1, 128, 32>}, {transform_indices = @transform_1, window_bounds = array<i64: 1, 128, 32>}, {pipeline_mode = #tpu.pipeline_mode<synchronous>, transform_indices = @transform_2, window_bounds = array<i64: 32, 4>}, {pipeline_mode = #tpu.pipeline_mode<synchronous>, transform_indices = @transform_3, window_bounds = array<i64: 1, 4>}, {pipeline_mode = #tpu.pipeline_mode<synchronous>, transform_indices = @transform_4, window_bounds = array<i64: 32, 4>}, {pipeline_mode = #tpu.pipeline_mode<synchronous>, transform_indices = @transform_5, window_bounds = array<i64: 1, 4>}, {pipeline_mode = #tpu.pipeline_mode<synchronous>, transform_indices = @transform_6, window_bounds = array<i64: 32, 32>}, {pipeline_mode = #tpu.pipeline_mode<synchronous>, transform_indices = @transform_7, window_bounds = array<i64: 1, 32>}, {pipeline_mode = #tpu.pipeline_mode<synchronous>, transform_indices = @transform_8, window_bounds = array<i64: 64, 4>}, {pipeline_mode = #tpu.pipeline_mode<synchronous>, transform_indices = @transform_9, window_bounds = array<i64: 4, 32>}, {transform_indices = @transform_10, window_bounds = array<i64: 2>}, {transform_indices = @transform_11, window_bounds = array<i64: 1, 128, 32>}]} {
    %c0_i32 = arith.constant 0 : i32
    %0 = arith.cmpi eq, %arg2, %c0_i32 : i32
    %1 = arith.extui %0 : i1 to i32
    %c0_i32_0 = arith.constant 0 : i32
    %2 = arith.cmpi ne, %1, %c0_i32_0 : i32
    scf.if %2 {
      %c0_41 = arith.constant 0 : index
      %c0_42 = arith.constant 0 : index
      %c0_43 = arith.constant 0 : index
      %59 = vector.load %arg3[%c0_41, %c0_42, %c0_43] : memref<1x128x32xf32, #tpu.memory_space<vmem>>, vector<1x128x32xf32>
      %60 = vector.shape_cast %59 : vector<1x128x32xf32> to vector<128x32xf32>
      %61 = arith.truncf %60 : vector<128x32xf32> to vector<128x32xbf16>
      %c0_44 = arith.constant 0 : index
      %c0_45 = arith.constant 0 : index
      %62 = vector.load %arg5[%c0_44, %c0_45] : memref<32x4xf32, #tpu.memory_space<vmem>>, vector<32x4xf32>
      %63 = arith.truncf %62 : vector<32x4xf32> to vector<32x4xbf16>
      %cst_46 = arith.constant dense<0.000000e+00> : vector<128x4xf32>
      %64 = tpu.matmul %61, %63, %cst_46 {dimension_numbers = #tpu.dot_dimension_numbers<[1], [0], [0], [1], [0, 0, 1, 1], [], []>} : vector<128x32xbf16>, vector<32x4xbf16>, vector<128x4xf32> -> vector<128x4xf32>
      %c0_47 = arith.constant 0 : index
      %c0_48 = arith.constant 0 : index
      %65 = vector.load %arg6[%c0_47, %c0_48] : memref<1x4xf32, #tpu.memory_space<vmem>>, vector<1x4xf32>
      %66 = vector.broadcast %65 : vector<1x4xf32> to vector<128x4xf32>
      %67 = arith.addf %64, %66 : vector<128x4xf32>
      %68 = arith.truncf %67 : vector<128x4xf32> to vector<128x4xbf16>
      %c0_49 = arith.constant 0 : index
      %c0_50 = arith.constant 0 : index
      %69 = vector.load %arg15[%c0_49, %c0_50] : memref<128x4xbf16, #tpu.memory_space<vmem>>, vector<128x4xbf16>
      tpu.vector_store %arg15[%c0_49, %c0_50], %68 {strides = array<i32>} : memref<128x4xbf16, #tpu.memory_space<vmem>>, vector<128x4xbf16>,
      %cst_51 = arith.constant 0xFF800000 : f32
      %70 = vector.broadcast %cst_51 : f32 to vector<128x1xf32>
      %c0_52 = arith.constant 0 : index
      %c0_53 = arith.constant 0 : index
      %71 = vector.load %arg16[%c0_52, %c0_53] : memref<128x1xf32, #tpu.memory_space<vmem>>, vector<128x1xf32>
      tpu.vector_store %arg16[%c0_52, %c0_53], %70 {strides = array<i32>} : memref<128x1xf32, #tpu.memory_space<vmem>>, vector<128x1xf32>,
      %cst_54 = arith.constant 0.000000e+00 : f32
      %72 = vector.broadcast %cst_54 : f32 to vector<128x1xf32>
      %c0_55 = arith.constant 0 : index
      %c0_56 = arith.constant 0 : index
      %73 = vector.load %arg17[%c0_55, %c0_56] : memref<128x1xf32, #tpu.memory_space<vmem>>, vector<128x1xf32>
      tpu.vector_store %arg17[%c0_55, %c0_56], %72 {strides = array<i32>} : memref<128x1xf32, #tpu.memory_space<vmem>>, vector<128x1xf32>,
      %cst_57 = arith.constant 0.000000e+00 : f32
      %74 = vector.broadcast %cst_57 : f32 to vector<128x32xf32>
      %c0_58 = arith.constant 0 : index
      %c0_59 = arith.constant 0 : index
      %75 = vector.load %arg18[%c0_58, %c0_59] : memref<128x32xf32, #tpu.memory_space<vmem>>, vector<128x32xf32>
      tpu.vector_store %arg18[%c0_58, %c0_59], %74 {strides = array<i32>} : memref<128x32xf32, #tpu.memory_space<vmem>>, vector<128x32xf32>,
      %cst_60 = arith.constant 0.000000e+00 : f32
      %76 = vector.broadcast %cst_60 : f32 to vector<1x32xf32>
      %c0_61 = arith.constant 0 : index
      %c0_62 = arith.constant 0 : index
      %77 = vector.load %arg19[%c0_61, %c0_62] : memref<1x32xf32, #tpu.memory_space<vmem>>, vector<1x32xf32>
      tpu.vector_store %arg19[%c0_61, %c0_62], %76 {strides = array<i32>} : memref<1x32xf32, #tpu.memory_space<vmem>>, vector<1x32xf32>,
      %cst_63 = arith.constant 0.000000e+00 : f32
      %78 = vector.broadcast %cst_63 : f32 to vector<1x32xf32>
      %c0_64 = arith.constant 0 : index
      %c0_65 = arith.constant 0 : index
      %79 = vector.load %arg20[%c0_64, %c0_65] : memref<1x32xf32, #tpu.memory_space<vmem>>, vector<1x32xf32>
      tpu.vector_store %arg20[%c0_64, %c0_65], %78 {strides = array<i32>} : memref<1x32xf32, #tpu.memory_space<vmem>>, vector<1x32xf32>,
    } else {
    }
    %c0 = arith.constant 0 : index
    %c0_1 = arith.constant 0 : index
    %c0_2 = arith.constant 0 : index
    %3 = vector.load %arg4[%c0, %c0_1, %c0_2] : memref<1x128x32xf32, #tpu.memory_space<vmem>>, vector<1x128x32xf32>
    %4 = vector.shape_cast %3 : vector<1x128x32xf32> to vector<128x32xf32>
    %5 = arith.truncf %4 : vector<128x32xf32> to vector<128x32xbf16>
    %c0_3 = arith.constant 0 : index
    %c0_4 = arith.constant 0 : index
    %6 = vector.load %arg7[%c0_3, %c0_4] : memref<32x4xf32, #tpu.memory_space<vmem>>, vector<32x4xf32>
    %7 = arith.truncf %6 : vector<32x4xf32> to vector<32x4xbf16>
    %cst = arith.constant dense<0.000000e+00> : vector<128x4xf32>
    %8 = tpu.matmul %5, %7, %cst {dimension_numbers = #tpu.dot_dimension_numbers<[1], [0], [0], [1], [0, 0, 1, 1], [], []>} : vector<128x32xbf16>, vector<32x4xbf16>, vector<128x4xf32> -> vector<128x4xf32>
    %c0_5 = arith.constant 0 : index
    %c0_6 = arith.constant 0 : index
    %9 = vector.load %arg8[%c0_5, %c0_6] : memref<1x4xf32, #tpu.memory_space<vmem>>, vector<1x4xf32>
    %10 = vector.broadcast %9 : vector<1x4xf32> to vector<128x4xf32>
    %11 = arith.addf %8, %10 : vector<128x4xf32>
    %c0_7 = arith.constant 0 : index
    %c0_8 = arith.constant 0 : index
    %12 = vector.load %arg9[%c0_7, %c0_8] : memref<32x32xf32, #tpu.memory_space<vmem>>, vector<32x32xf32>
    %13 = arith.truncf %12 : vector<32x32xf32> to vector<32x32xbf16>
    %cst_9 = arith.constant dense<0.000000e+00> : vector<128x32xf32>
    %14 = tpu.matmul %5, %13, %cst_9 {dimension_numbers = #tpu.dot_dimension_numbers<[1], [0], [0], [1], [0, 0, 1, 1], [], []>} : vector<128x32xbf16>, vector<32x32xbf16>, vector<128x32xf32> -> vector<128x32xf32>
    %c0_10 = arith.constant 0 : index
    %c0_11 = arith.constant 0 : index
    %15 = vector.load %arg10[%c0_10, %c0_11] : memref<1x32xf32, #tpu.memory_space<vmem>>, vector<1x32xf32>
    %16 = vector.broadcast %15 : vector<1x32xf32> to vector<128x32xf32>
    %17 = arith.addf %14, %16 : vector<128x32xf32>
    %c0_12 = arith.constant 0 : index
    %c0_13 = arith.constant 0 : index
    %18 = vector.load %arg15[%c0_12, %c0_13] : memref<128x4xbf16, #tpu.memory_space<vmem>>, vector<128x4xbf16>
    %19 = arith.truncf %11 : vector<128x4xf32> to vector<128x4xbf16>
    %cst_14 = arith.constant dense<0.000000e+00> : vector<128x128xf32>
    %20 = tpu.matmul %18, %19, %cst_14 {dimension_numbers = #tpu.dot_dimension_numbers<[1], [1], [0], [0], [0, 0, 1, 0], [], []>} : vector<128x4xbf16>, vector<128x4xbf16>, vector<128x128xf32> -> vector<128x128xf32>
    %c0_15 = arith.constant 0 : index
    %c0_16 = arith.constant 0 : index
    %21 = vector.load %arg16[%c0_15, %c0_16] : memref<128x1xf32, #tpu.memory_space<vmem>>, vector<128x1xf32>
    %cst_17 = arith.constant dense<0xFF800000> : vector<128xf32>
    %22 = vector.multi_reduction <maximumf>, %20, %cst_17 [1] : vector<128x128xf32> to vector<128xf32>
    %23 = vector.shape_cast %22 : vector<128xf32> to vector<128x1xf32>
    %24 = arith.maximumf %21, %23 : vector<128x1xf32>
    %25 = arith.subf %21, %24 : vector<128x1xf32>
    %26 = math.exp %25 : vector<128x1xf32>
    %27 = vector.broadcast %24 : vector<128x1xf32> to vector<128x128xf32>
    %28 = arith.subf %20, %27 : vector<128x128xf32>
    %29 = math.exp %28 : vector<128x128xf32>
    %c0_18 = arith.constant 0 : index
    %c0_19 = arith.constant 0 : index
    %30 = vector.load %arg17[%c0_18, %c0_19] : memref<128x1xf32, #tpu.memory_space<vmem>>, vector<128x1xf32>
    %31 = arith.mulf %26, %30 : vector<128x1xf32>
    %cst_20 = arith.constant dense<0.000000e+00> : vector<128xf32>
    %32 = vector.multi_reduction <add>, %29, %cst_20 [1] : vector<128x128xf32> to vector<128xf32>
    %33 = vector.shape_cast %32 : vector<128xf32> to vector<128x1xf32>
    %34 = arith.addf %31, %33 : vector<128x1xf32>
    %c0_21 = arith.constant 0 : index
    %c0_22 = arith.constant 0 : index
    %35 = vector.load %arg17[%c0_21, %c0_22] : memref<128x1xf32, #tpu.memory_space<vmem>>, vector<128x1xf32>
    tpu.vector_store %arg17[%c0_21, %c0_22], %34 {strides = array<i32>} : memref<128x1xf32, #tpu.memory_space<vmem>>, vector<128x1xf32>,
    %c0_23 = arith.constant 0 : index
    %c0_24 = arith.constant 0 : index
    %36 = vector.load %arg18[%c0_23, %c0_24] : memref<128x32xf32, #tpu.memory_space<vmem>>, vector<128x32xf32>
    %37 = vector.broadcast %26 : vector<128x1xf32> to vector<128x32xf32>
    %38 = arith.mulf %37, %36 : vector<128x32xf32>
    %39 = arith.truncf %29 : vector<128x128xf32> to vector<128x128xbf16>
    %40 = arith.truncf %17 : vector<128x32xf32> to vector<128x32xbf16>
    %cst_25 = arith.constant dense<0.000000e+00> : vector<128x32xf32>
    %41 = tpu.matmul %39, %40, %cst_25 {dimension_numbers = #tpu.dot_dimension_numbers<[1], [0], [0], [1], [0, 0, 1, 1], [], []>} : vector<128x128xbf16>, vector<128x32xbf16>, vector<128x32xf32> -> vector<128x32xf32>
    %42 = arith.addf %38, %41 : vector<128x32xf32>
    %c0_26 = arith.constant 0 : index
    %c0_27 = arith.constant 0 : index
    %43 = vector.load %arg18[%c0_26, %c0_27] : memref<128x32xf32, #tpu.memory_space<vmem>>, vector<128x32xf32>
    tpu.vector_store %arg18[%c0_26, %c0_27], %42 {strides = array<i32>} : memref<128x32xf32, #tpu.memory_space<vmem>>, vector<128x32xf32>,
    %c0_28 = arith.constant 0 : index
    %c0_29 = arith.constant 0 : index
    %44 = vector.load %arg16[%c0_28, %c0_29] : memref<128x1xf32, #tpu.memory_space<vmem>>, vector<128x1xf32>
    tpu.vector_store %arg16[%c0_28, %c0_29], %24 {strides = array<i32>} : memref<128x1xf32, #tpu.memory_space<vmem>>, vector<128x1xf32>,
    %c0_30 = arith.constant 0 : index
    %c0_31 = arith.constant 0 : index
    %45 = vector.load %arg19[%c0_30, %c0_31] : memref<1x32xf32, #tpu.memory_space<vmem>>, vector<1x32xf32>
    %cst_32 = arith.constant dense<0.000000e+00> : vector<32xf32>
    %46 = vector.multi_reduction <add>, %4, %cst_32 [0] : vector<128x32xf32> to vector<32xf32>
    %47 = vector.shape_cast %46 : vector<32xf32> to vector<1x32xf32>
    %48 = arith.addf %45, %47 : vector<1x32xf32>
    %c0_33 = arith.constant 0 : index
    %c0_34 = arith.constant 0 : index
    %49 = vector.load %arg19[%c0_33, %c0_34] : memref<1x32xf32, #tpu.memory_space<vmem>>, vector<1x32xf32>
    tpu.vector_store %arg19[%c0_33, %c0_34], %48 {strides = array<i32>} : memref<1x32xf32, #tpu.memory_space<vmem>>, vector<1x32xf32>,
    %c0_35 = arith.constant 0 : index
    %c0_36 = arith.constant 0 : index
    %50 = vector.load %arg20[%c0_35, %c0_36] : memref<1x32xf32, #tpu.memory_space<vmem>>, vector<1x32xf32>
    %51 = arith.mulf %4, %4 : vector<128x32xf32>
    %cst_37 = arith.constant dense<0.000000e+00> : vector<32xf32>
    %52 = vector.multi_reduction <add>, %51, %cst_37 [0] : vector<128x32xf32> to vector<32xf32>
    %53 = vector.shape_cast %52 : vector<32xf32> to vector<1x32xf32>
    %54 = arith.addf %50, %53 : vector<1x32xf32>
    %c0_38 = arith.constant 0 : index
    %c0_39 = arith.constant 0 : index
    %55 = vector.load %arg20[%c0_38, %c0_39] : memref<1x32xf32, #tpu.memory_space<vmem>>, vector<1x32xf32>
    tpu.vector_store %arg20[%c0_38, %c0_39], %54 {strides = array<i32>} : memref<1x32xf32, #tpu.memory_space<vmem>>, vector<1x32xf32>,
    %c1_i32 = arith.constant 1 : i32
    %56 = arith.cmpi eq, %arg2, %c1_i32 : i32
    %57 = arith.extui %56 : i1 to i32
    %c0_i32_40 = arith.constant 0 : i32
    %58 = arith.cmpi ne, %57, %c0_i32_40 : i32
    scf.if %58 {
      %c0_41 = arith.constant 0 : index
      %59 = memref.load %arg13[%c0_41] : memref<2xf32, #tpu.memory_space<smem>>
      %c1 = arith.constant 1 : index
      %60 = memref.load %arg13[%c1] : memref<2xf32, #tpu.memory_space<smem>>
      %c0_42 = arith.constant 0 : index
      %c0_43 = arith.constant 0 : index
      %c0_44 = arith.constant 0 : index
      %61 = vector.load %arg3[%c0_42, %c0_43, %c0_44] : memref<1x128x32xf32, #tpu.memory_space<vmem>>, vector<1x128x32xf32>
      %62 = vector.shape_cast %61 : vector<1x128x32xf32> to vector<128x32xf32>
      %c0_45 = arith.constant 0 : index
      %c0_46 = arith.constant 0 : index
      %63 = vector.load %arg19[%c0_45, %c0_46] : memref<1x32xf32, #tpu.memory_space<vmem>>, vector<1x32xf32>
      %cst_47 = arith.constant 2.560000e+02 : f32
      %64 = vector.broadcast %cst_47 : f32 to vector<1x32xf32>
      %65 = arith.divf %63, %64 : vector<1x32xf32>
      %c0_48 = arith.constant 0 : index
      %c0_49 = arith.constant 0 : index
      %66 = vector.load %arg20[%c0_48, %c0_49] : memref<1x32xf32, #tpu.memory_space<vmem>>, vector<1x32xf32>
      %cst_50 = arith.constant 2.560000e+02 : f32
      %67 = vector.broadcast %cst_50 : f32 to vector<1x32xf32>
      %68 = arith.mulf %67, %65 : vector<1x32xf32>
      %69 = arith.mulf %68, %65 : vector<1x32xf32>
      %70 = arith.subf %66, %69 : vector<1x32xf32>
      %cst_51 = arith.constant 2.550000e+02 : f32
      %71 = vector.broadcast %cst_51 : f32 to vector<1x32xf32>
      %72 = arith.divf %70, %71 : vector<1x32xf32>
      %cst_52 = arith.constant 0.000000e+00 : f32
      %73 = vector.broadcast %cst_52 : f32 to vector<1x32xf32>
      %74 = arith.maximumf %72, %73 : vector<1x32xf32>
      %75 = math.sqrt %74 : vector<1x32xf32>
      %c0_53 = arith.constant 0 : index
      %c0_54 = arith.constant 0 : index
      %76 = vector.load %arg11[%c0_53, %c0_54] : memref<64x4xf32, #tpu.memory_space<vmem>>, vector<32x4xf32>
      %cst_55 = arith.constant dense<0.000000e+00> : vector<1x4xf32>
      %77 = tpu.matmul %65, %76, %cst_55 {dimension_numbers = #tpu.dot_dimension_numbers<[1], [0], [0], [1], [0, 0, 1, 1], [], []>} : vector<1x32xf32>, vector<32x4xf32>, vector<1x4xf32> -> vector<1x4xf32>
      %c32 = arith.constant 32 : index
      %c0_56 = arith.constant 0 : index
      %78 = vector.load %arg11[%c32, %c0_56] : memref<64x4xf32, #tpu.memory_space<vmem>>, vector<32x4xf32>
      %cst_57 = arith.constant dense<0.000000e+00> : vector<1x4xf32>
      %79 = tpu.matmul %75, %78, %cst_57 {dimension_numbers = #tpu.dot_dimension_numbers<[1], [0], [0], [1], [0, 0, 1, 1], [], []>} : vector<1x32xf32>, vector<32x4xf32>, vector<1x4xf32> -> vector<1x4xf32>
      %80 = arith.addf %77, %79 : vector<1x4xf32>
      %cst_58 = arith.constant 0.000000e+00 : f32
      %81 = vector.broadcast %cst_58 : f32 to vector<1x4xf32>
      %82 = arith.maximumf %80, %81 : vector<1x4xf32>
      %c0_59 = arith.constant 0 : index
      %c0_60 = arith.constant 0 : index
      %83 = vector.load %arg12[%c0_59, %c0_60] : memref<4x32xf32, #tpu.memory_space<vmem>>, vector<4x32xf32>
      %cst_61 = arith.constant dense<0.000000e+00> : vector<1x32xf32>
      %84 = tpu.matmul %82, %83, %cst_61 {dimension_numbers = #tpu.dot_dimension_numbers<[1], [0], [0], [1], [0, 0, 1, 1], [], []>} : vector<1x4xf32>, vector<4x32xf32>, vector<1x32xf32> -> vector<1x32xf32>
      %85 = arith.negf %84 : vector<1x32xf32>
      %86 = math.exp %85 : vector<1x32xf32>
      %cst_62 = arith.constant 1.000000e+00 : f32
      %87 = vector.broadcast %cst_62 : f32 to vector<1x32xf32>
      %88 = arith.addf %87, %86 : vector<1x32xf32>
      %89 = arith.divf %87, %88 : vector<1x32xf32>
      %c0_63 = arith.constant 0 : index
      %c0_64 = arith.constant 0 : index
      %90 = vector.load %arg17[%c0_63, %c0_64] : memref<128x1xf32, #tpu.memory_space<vmem>>, vector<128x1xf32>
      %91 = tpu.reciprocal %90 {approx = true} : vector<128x1xf32> -> vector<128x1xf32>
      %c0_65 = arith.constant 0 : index
      %c0_66 = arith.constant 0 : index
      %92 = vector.load %arg18[%c0_65, %c0_66] : memref<128x32xf32, #tpu.memory_space<vmem>>, vector<128x32xf32>
      %93 = vector.broadcast %91 : vector<128x1xf32> to vector<128x32xf32>
      %94 = arith.mulf %92, %93 : vector<128x32xf32>
      %95 = vector.broadcast %59 : f32 to vector<128x32xf32>
      %96 = arith.mulf %95, %94 : vector<128x32xf32>
      %97 = vector.broadcast %60 : f32 to vector<1x32xf32>
      %98 = arith.mulf %97, %89 : vector<1x32xf32>
      %99 = vector.broadcast %98 : vector<1x32xf32> to vector<128x32xf32>
      %100 = arith.mulf %99, %62 : vector<128x32xf32>
      %101 = arith.addf %96, %100 : vector<128x32xf32>
      %102 = arith.addf %101, %62 : vector<128x32xf32>
      %c0_67 = arith.constant 0 : index
      %c0_68 = arith.constant 0 : index
      %c0_69 = arith.constant 0 : index
      %103 = vector.load %arg14[%c0_67, %c0_68, %c0_69] : memref<1x128x32xf32, #tpu.memory_space<vmem>>, vector<1x128x32xf32>
      %104 = vector.shape_cast %103 : vector<1x128x32xf32> to vector<128x32xf32>
      %105 = vector.shape_cast %102 : vector<128x32xf32> to vector<1x128x32xf32>
      tpu.vector_store %arg14[%c0_67, %c0_68, %c0_69], %105 {strides = array<i32>} : memref<1x128x32xf32, #tpu.memory_space<vmem>>, vector<1x128x32xf32>,
    } else {
    }
    return
  }
  func.func @transform_0(%arg0: i32, %arg1: i32, %arg2: i32) -> (i32, i32, i32) {
    %c0_i32 = arith.constant 0 : i32
    %c0_i32_0 = arith.constant 0 : i32
    return %arg0, %arg1, %c0_i32 : i32, i32, i32
  }
  func.func @transform_1(%arg0: i32, %arg1: i32, %arg2: i32) -> (i32, i32, i32) {
    %c0_i32 = arith.constant 0 : i32
    %c0_i32_0 = arith.constant 0 : i32
    return %arg0, %arg2, %c0_i32 : i32, i32, i32
  }
  func.func @transform_2(%arg0: i32, %arg1: i32, %arg2: i32) -> (i32, i32) {
    %c0_i32 = arith.constant 0 : i32
    %c0_i32_0 = arith.constant 0 : i32
    %c0_i32_1 = arith.constant 0 : i32
    return %c0_i32, %c0_i32_0 : i32, i32
  }
  func.func @transform_3(%arg0: i32, %arg1: i32, %arg2: i32) -> (i32, i32) {
    %c0_i32 = arith.constant 0 : i32
    %c0_i32_0 = arith.constant 0 : i32
    %c0_i32_1 = arith.constant 0 : i32
    return %c0_i32, %c0_i32_0 : i32, i32
  }
  func.func @transform_4(%arg0: i32, %arg1: i32, %arg2: i32) -> (i32, i32) {
    %c0_i32 = arith.constant 0 : i32
    %c0_i32_0 = arith.constant 0 : i32
    %c0_i32_1 = arith.constant 0 : i32
    return %c0_i32, %c0_i32_0 : i32, i32
  }
  func.func @transform_5(%arg0: i32, %arg1: i32, %arg2: i32) -> (i32, i32) {
    %c0_i32 = arith.constant 0 : i32
    %c0_i32_0 = arith.constant 0 : i32
    %c0_i32_1 = arith.constant 0 : i32
    return %c0_i32, %c0_i32_0 : i32, i32
  }
  func.func @transform_6(%arg0: i32, %arg1: i32, %arg2: i32) -> (i32, i32) {
    %c0_i32 = arith.constant 0 : i32
    %c0_i32_0 = arith.constant 0 : i32
    %c0_i32_1 = arith.constant 0 : i32
    return %c0_i32, %c0_i32_0 : i32, i32
  }
  func.func @transform_7(%arg0: i32, %arg1: i32, %arg2: i32) -> (i32, i32) {
    %c0_i32 = arith.constant 0 : i32
    %c0_i32_0 = arith.constant 0 : i32
    %c0_i32_1 = arith.constant 0 : i32
    return %c0_i32, %c0_i32_0 : i32, i32
  }
  func.func @transform_8(%arg0: i32, %arg1: i32, %arg2: i32) -> (i32, i32) {
    %c0_i32 = arith.constant 0 : i32
    %c0_i32_0 = arith.constant 0 : i32
    %c0_i32_1 = arith.constant 0 : i32
    return %c0_i32, %c0_i32_0 : i32, i32
  }
  func.func @transform_9(%arg0: i32, %arg1: i32, %arg2: i32) -> (i32, i32) {
    %c0_i32 = arith.constant 0 : i32
    %c0_i32_0 = arith.constant 0 : i32
    %c0_i32_1 = arith.constant 0 : i32
    return %c0_i32, %c0_i32_0 : i32, i32
  }
  func.func @transform_10(%arg0: i32, %arg1: i32, %arg2: i32) -> i32 {
    %c0_i32 = arith.constant 0 : i32
    %c0_i32_0 = arith.constant 0 : i32
    return %c0_i32 : i32
  }
  func.func @transform_11(%arg0: i32, %arg1: i32, %arg2: i32) -> (i32, i32, i32) {
    %c0_i32 = arith.constant 0 : i32
    %c0_i32_0 = arith.constant 0 : i32
    return %arg0, %arg1, %c0_i32 : i32, i32, i32
  }
}

</mosaic_0001>

<llo_original>
// kernel: _lambda_.1
$region0: #{_lambda_.1}
  #allocation0 [shape = 'u32[]', space=smem, size = 0x4, offset = 0x4, fixed_abs, tag = 'smem constant byte address 0x4 - core index']
  #allocation1 [shape = 'u32[144,128]{1,0:T(1,128)}', space=vmem, size = 0x12000, scoped, tag = 'internal scratch']
  #allocation2 [shape = 'bf16[128,4]{1,0:T(16,128)(2,1)}', space=vmem, size = 0x8000, scoped, tag = 'scratch operand']
  #allocation3 [shape = 'f32[128,1]{1,0:T(8,128)}', space=vmem, size = 0x10000, scoped, tag = 'scratch operand']
  #allocation4 [shape = 'f32[128,1]{1,0:T(8,128)}', space=vmem, size = 0x10000, scoped, tag = 'scratch operand']
  #allocation5 [shape = 'f32[128,32]{1,0:T(8,128)}', space=vmem, size = 0x10000, scoped, tag = 'scratch operand']
  #allocation6 [shape = 'f32[1,32]{1,0:T(1,128)}', space=vmem, size = 0x200, scoped, tag = 'scratch operand']
  #allocation7 [shape = 'f32[1,32]{1,0:T(1,128)}', space=vmem, size = 0x200, scoped, tag = 'scratch operand']
  %s0 = inlined_call_operand.hbm [shape: f32[2,256,32], index: 0, kind: input, shape index: {}, may-alias: {0,1}]
  %s1 = inlined_call_operand.hbm [shape: f32[2,256,32], index: 1, kind: input, shape index: {}, may-alias: {0,1}]
  %s2 = inlined_call_operand.hbm [shape: f32[32,4], index: 2, kind: input, shape index: {}]
  %s3 = inlined_call_operand.vmem [shape: f32[1,4], index: 3, kind: input, shape index: {}]
  %s4 = inlined_call_operand.hbm [shape: f32[32,4], index: 4, kind: input, shape index: {}]
  %s5 = inlined_call_operand.vmem [shape: f32[1,4], index: 5, kind: input, shape index: {}]
  %s6 = inlined_call_operand.hbm [shape: f32[32,32], index: 6, kind: input, shape index: {}]
  %s7 = inlined_call_operand.vmem [shape: f32[1,32], index: 7, kind: input, shape index: {}]
  %s8 = inlined_call_operand.hbm [shape: f32[64,4], index: 8, kind: input, shape index: {}]
  %s9 = inlined_call_operand.vmem [shape: f32[4,32], index: 9, kind: input, shape index: {}]
  %s10 = inlined_call_operand.vmem [shape: f32[2], index: 10, kind: input, shape index: {}]
  %s11 = inlined_call_operand.hbm [shape: f32[2,256,32], index: 11, kind: output, shape index: {}]
  %s12 = sld [smem:[#allocation0]]
  $region113: #{_lambda_.1} parent=0
    _
  %s14 = ssub.s32 1, %s12
  %s15 = scalar_select 0, %s14, %s12
  $region1: #{_lambda_.1} parent=0
    #allocation8 [shape = 'u8[131072]{0}', space=vmem, size = 0x20000, scoped, tag = 'input window, operand 0']
    #allocation9 [shape = 's32[2]{0}', space=sflag, size = 0x8, scoped, tag = 'scoped memory for _lambda_.1']
    #allocation10 [shape = 's32[2]{0}', space=sflag, size = 0x8, scoped, tag = 'scoped memory for _lambda_.1']
    #allocation11 [shape = 's32[2]{0}', space=sflag, size = 0x8, scoped, tag = 'scoped memory for _lambda_.1']
    #allocation12 [shape = 'u8[131072]{0}', space=vmem, size = 0x20000, scoped, tag = 'input window, operand 1']
    #allocation13 [shape = 's32[2]{0}', space=sflag, size = 0x8, scoped, tag = 'scoped memory for _lambda_.1']
    #allocation14 [shape = 'u8[16384]{0}', space=vmem, size = 0x4000, scoped, tag = 'input window, operand 2, single buffered']
    #allocation15 [shape = 'u8[16384]{0}', space=vmem, size = 0x4000, scoped, tag = 'input window, operand 4, single buffered']
    #allocation16 [shape = 's32[1]{0}', space=sflag, size = 0x4, scoped, tag = 'scoped memory for _lambda_.1']
    #allocation17 [shape = 'u8[16384]{0}', space=vmem, size = 0x4000, scoped, tag = 'input window, operand 6, single buffered']
    #allocation18 [shape = 'u8[32768]{0}', space=vmem, size = 0x8000, scoped, tag = 'input window, operand 8, single buffered']
    #allocation19 [shape = 's32[1]{0}', space=sflag, size = 0x4, scoped, tag = 'scoped memory for _lambda_.1']
    #allocation20 [shape = 'u8[512]{0}', space=smem, size = 0x200, scoped, tag = 'input window, operand 10, single buffered']
    #allocation21 [shape = 'u8[131072]{0}', space=vmem, size = 0x20000, scoped, tag = 'output window, operand 0']
    %16 = vsyncpa [#allocation9], 0
    %s17 = scalar_lea.sflag [#allocation9], 1
    %18 = vsyncpa %s17, 0
    %19 = vsyncpa [#allocation13], 0
    %s20 = scalar_lea.sflag [#allocation13], 1
    %21 = vsyncpa %s20, 0
    %22 = vsyncpa [#allocation16], 0
    %23 = vsyncpa [#allocation19], 0
    %24 = vsyncpa [#allocation11], 0
    %25 = vsyncpa [#allocation10], 0
    %s26 = scalar_lea.sflag [#allocation10], 1
    %27 = vsyncpa %s26, 0
    loop: start=0, step=1, limit=10
    $region2: #{_lambda_.1} parent=1 // loop_pre_header
      _
    $region3: #{_lambda_.1} parent=1 // loop_header
      %s29 = sphi 0, %s33
      %p30 = scmp.ge.s32.totalorder %s29, 10
      %s36 = sphi 0, %s55
      %s37 = sphi 0, %s51
      %s38 = sphi 0, %s47
      %s39 = sphi 0, %s36
      %s40 = sphi 0, %s37
      %s41 = sphi 0, %s38
      %s42 = sphi 0, %s39
      %s43 = sphi 0, %s40
      %s44 = sphi 0, %s41
      %s60 = sphi 0, %s62
      %s63 = sphi 0, %s60
      %s64 = sphi 0, %s63
      %s80 = sphi 0, %s64
      %s88 = sphi 0, %s90
      %s91 = sphi 0, %s88
      %s92 = sphi 0, %s91
      %s108 = sphi 0, %s92
      %s112 = sphi 0, %s112
      %s114 = sphi 0, %s112
      %s115 = sphi 0, %s114
      %s129 = sphi 0, %s115
      %s133 = sphi 0, %s133
      %s135 = sphi 0, %s133
      %s136 = sphi 0, %s135
      %s150 = sphi 0, %s136
      %s154 = sphi 0, %s154
      %s156 = sphi 0, %s154
      %s157 = sphi 0, %s156
      %s171 = sphi 0, %s157
      %s175 = sphi 0, %s175
      %s177 = sphi 0, %s175
      %s178 = sphi 0, %s177
      %s192 = sphi 0, %s178
      %s196 = sphi 0, %s196
      %s198 = sphi 0, %s196
      %s199 = sphi 0, %s198
      %s213 = sphi 0, %s199
      %s217 = sphi 0, %s217
      %s219 = sphi 0, %s217
      %s220 = sphi 0, %s219
      %s234 = sphi 0, %s220
      %s238 = sphi 0, %s238
      %s240 = sphi 0, %s238
      %s241 = sphi 0, %s240
      %s255 = sphi 0, %s241
      %s259 = sphi 0, %s259
      %s261 = sphi 0, %s259
      %s262 = sphi 0, %s261
      %s276 = sphi 0, %s262
      %s280 = sphi 0, %s280
      %s282 = sphi 0, %s280
      %s283 = sphi 0, %s282
      %s297 = sphi 0, %s283
      %s305 = sphi 0, %s307
      %s308 = sphi 0, %s305
      %s309 = sphi 0, %s308
      %s325 = sphi 0, %s309
    $region4: #{_lambda_.1} parent=1 // loop_header_branch
      %32 = sbr.rel (%p30) target = $region8
    $region5: #{_lambda_.1} parent=1 // loop_body
      %s34 = ssub.s32 %s29, 1
      %s35 = ssub.s32 %s29, 2
      %s45 = sadd.s32 1, %s38
      %p46 = scmp.ge.s32.totalorder %s45, 2
      %s47 = scalar_select %p46, 0, %s45
      %s48 = sadd.s32 1, %s37
      %s49 = scalar_select %p46, %s48, %s37
      %p50 = scmp.ge.s32.totalorder %s49, 2
      %s51 = scalar_select %p50, 0, %s49
      %s52 = sadd.s32 1, %s36
      %s53 = scalar_select %p50, %s52, %s36
      %p54 = scmp.ge.s32.totalorder %s53, 2
      %s55 = scalar_select %p54, 0, %s53
      %s56 = ssub.s32 %s36, %s55
      %s57 = ssub.s32 %s37, %s51
      %s58 = sor.u32 %s56, %s57
      %p59 = scmp.eq.s32.totalorder %s58, 0
      %s61 = sadd.s32 %s60, 1
      %s62 = scalar_select %p59, %s60, %s61
      %p65 = pneg %p59
      %p66 = scmp.eq.s32.totalorder %s29, 7
      %p67 = por %p65, %p66
      %p68 = scmp.ne.s32.totalorder %s60, %s63
      %p69 = scmp.eq.s32.totalorder %s29, 0
      %p70 = por %p68, %p69
      %p71 = scmp.ne.s32.totalorder %s60, %s63
      %p72 = scmp.eq.s32.totalorder %s34, 7
      %p73 = por %p71, %p72
      %p74 = scmp.ne.s32.totalorder %s63, %s64
      %p75 = scmp.eq.s32.totalorder %s34, 0
      %p76 = por %p74, %p75
      %p77 = scmp.ne.s32.totalorder %s63, %s64
      %p78 = scmp.eq.s32.totalorder %s35, 7
      %p79 = por %p77, %p78
      %p81 = scmp.ne.s32.totalorder %s64, %s80
      %p82 = scmp.eq.s32.totalorder %s35, 0
      %p83 = por %p81, %p82
      %s84 = ssub.s32 %s36, %s55
      %s85 = ssub.s32 %s38, %s47
      %s86 = sor.u32 %s84, %s85
      %p87 = scmp.eq.s32.totalorder %s86, 0
      %s89 = sadd.s32 %s88, 1
      %s90 = scalar_select %p87, %s88, %s89
      %p93 = pneg %p87
      %p94 = scmp.eq.s32.totalorder %s29, 7
      %p95 = por %p93, %p94
      %p96 = scmp.ne.s32.totalorder %s88, %s91
      %p97 = scmp.eq.s32.totalorder %s29, 0
      %p98 = por %p96, %p97
      %p99 = scmp.ne.s32.totalorder %s88, %s91
      %p100 = scmp.eq.s32.totalorder %s34, 7
      %p101 = por %p99, %p100
      %p102 = scmp.ne.s32.totalorder %s91, %s92
      %p103 = scmp.eq.s32.totalorder %s34, 0
      %p104 = por %p102, %p103
      %p105 = scmp.ne.s32.totalorder %s91, %s92
      %p106 = scmp.eq.s32.totalorder %s35, 7
      %p107 = por %p105, %p106
      %p109 = scmp.ne.s32.totalorder %s92, %s108
      %p110 = scmp.eq.s32.totalorder %s35, 0
      %p111 = por %p109, %p110
      %s113 = sadd.s32 %s112, 1
      %p116 = scmp.eq.s32.totalorder %s29, 7
      %p117 = scmp.ne.s32.totalorder %s112, %s114
      %p118 = scmp.eq.s32.totalorder %s29, 0
      %p119 = por %p117, %p118
      %p120 = scmp.ne.s32.totalorder %s112, %s114
      %p121 = scmp.eq.s32.totalorder %s34, 7
      %p122 = por %p120, %p121
      %p123 = scmp.ne.s32.totalorder %s114, %s115
      %p124 = scmp.eq.s32.totalorder %s34, 0
      %p125 = por %p123, %p124
      %p126 = scmp.ne.s32.totalorder %s114, %s115
      %p127 = scmp.eq.s32.totalorder %s35, 7
      %p128 = por %p126, %p127
      %p130 = scmp.ne.s32.totalorder %s115, %s129
      %p131 = scmp.eq.s32.totalorder %s35, 0
      %p132 = por %p130, %p131
      %s134 = sadd.s32 %s133, 1
      %p137 = scmp.eq.s32.totalorder %s29, 7
      %p138 = scmp.ne.s32.totalorder %s133, %s135
      %p139 = scmp.eq.s32.totalorder %s29, 0
      %p140 = por %p138, %p139
      %p141 = scmp.ne.s32.totalorder %s133, %s135
      %p142 = scmp.eq.s32.totalorder %s34, 7
      %p143 = por %p141, %p142
      %p144 = scmp.ne.s32.totalorder %s135, %s136
      %p145 = scmp.eq.s32.totalorder %s34, 0
      %p146 = por %p144, %p145
      %p147 = scmp.ne.s32.totalorder %s135, %s136
      %p148 = scmp.eq.s32.totalorder %s35, 7
      %p149 = por %p147, %p148
      %p151 = scmp.ne.s32.totalorder %s136, %s150
      %p152 = scmp.eq.s32.totalorder %s35, 0
      %p153 = por %p151, %p152
      %s155 = sadd.s32 %s154, 1
      %p158 = scmp.eq.s32.totalorder %s29, 7
      %p159 = scmp.ne.s32.totalorder %s154, %s156
      %p160 = scmp.eq.s32.totalorder %s29, 0
      %p161 = por %p159, %p160
      %p162 = scmp.ne.s32.totalorder %s154, %s156
      %p163 = scmp.eq.s32.totalorder %s34, 7
      %p164 = por %p162, %p163
      %p165 = scmp.ne.s32.totalorder %s156, %s157
      %p166 = scmp.eq.s32.totalorder %s34, 0
      %p167 = por %p165, %p166
      %p168 = scmp.ne.s32.totalorder %s156, %s157
      %p169 = scmp.eq.s32.totalorder %s35, 7
      %p170 = por %p168, %p169
      %p172 = scmp.ne.s32.totalorder %s157, %s171
      %p173 = scmp.eq.s32.totalorder %s35, 0
      %p174 = por %p172, %p173
      %s176 = sadd.s32 %s175, 1
      %p179 = scmp.eq.s32.totalorder %s29, 7
      %p180 = scmp.ne.s32.totalorder %s175, %s177
      %p181 = scmp.eq.s32.totalorder %s29, 0
      %p182 = por %p180, %p181
      %p183 = scmp.ne.s32.totalorder %s175, %s177
      %p184 = scmp.eq.s32.totalorder %s34, 7
      %p185 = por %p183, %p184
      %p186 = scmp.ne.s32.totalorder %s177, %s178
      %p187 = scmp.eq.s32.totalorder %s34, 0
      %p188 = por %p186, %p187
      %p189 = scmp.ne.s32.totalorder %s177, %s178
      %p190 = scmp.eq.s32.totalorder %s35, 7
      %p191 = por %p189, %p190
      %p193 = scmp.ne.s32.totalorder %s178, %s192
      %p194 = scmp.eq.s32.totalorder %s35, 0
      %p195 = por %p193, %p194
      %s197 = sadd.s32 %s196, 1
      %p200 = scmp.eq.s32.totalorder %s29, 7
      %p201 = scmp.ne.s32.totalorder %s196, %s198
      %p202 = scmp.eq.s32.totalorder %s29, 0
      %p203 = por %p201, %p202
      %p204 = scmp.ne.s32.totalorder %s196, %s198
      %p205 = scmp.eq.s32.totalorder %s34, 7
      %p206 = por %p204, %p205
      %p207 = scmp.ne.s32.totalorder %s198, %s199
      %p208 = scmp.eq.s32.totalorder %s34, 0
      %p209 = por %p207, %p208
      %p210 = scmp.ne.s32.totalorder %s198, %s199
      %p211 = scmp.eq.s32.totalorder %s35, 7
      %p212 = por %p210, %p211
      %p214 = scmp.ne.s32.totalorder %s199, %s213
      %p215 = scmp.eq.s32.totalorder %s35, 0
      %p216 = por %p214, %p215
      %s218 = sadd.s32 %s217, 1
      %p221 = scmp.eq.s32.totalorder %s29, 7
      %p222 = scmp.ne.s32.totalorder %s217, %s219
      %p223 = scmp.eq.s32.totalorder %s29, 0
      %p224 = por %p222, %p223
      %p225 = scmp.ne.s32.totalorder %s217, %s219
      %p226 = scmp.eq.s32.totalorder %s34, 7
      %p227 = por %p225, %p226
      %p228 = scmp.ne.s32.totalorder %s219, %s220
      %p229 = scmp.eq.s32.totalorder %s34, 0
      %p230 = por %p228, %p229
      %p231 = scmp.ne.s32.totalorder %s219, %s220
      %p232 = scmp.eq.s32.totalorder %s35, 7
      %p233 = por %p231, %p232
      %p235 = scmp.ne.s32.totalorder %s220, %s234
      %p236 = scmp.eq.s32.totalorder %s35, 0
      %p237 = por %p235, %p236
      %s239 = sadd.s32 %s238, 1
      %p242 = scmp.eq.s32.totalorder %s29, 7
      %p243 = scmp.ne.s32.totalorder %s238, %s240
      %p244 = scmp.eq.s32.totalorder %s29, 0
      %p245 = por %p243, %p244
      %p246 = scmp.ne.s32.totalorder %s238, %s240
      %p247 = scmp.eq.s32.totalorder %s34, 7
      %p248 = por %p246, %p247
      %p249 = scmp.ne.s32.totalorder %s240, %s241
      %p250 = scmp.eq.s32.totalorder %s34, 0
      %p251 = por %p249, %p250
      %p252 = scmp.ne.s32.totalorder %s240, %s241
      %p253 = scmp.eq.s32.totalorder %s35, 7
      %p254 = por %p252, %p253
      %p256 = scmp.ne.s32.totalorder %s241, %s255
      %p257 = scmp.eq.s32.totalorder %s35, 0
      %p258 = por %p256, %p257
      %s260 = sadd.s32 %s259, 1
      %p263 = scmp.eq.s32.totalorder %s29, 7
      %p264 = scmp.ne.s32.totalorder %s259, %s261
      %p265 = scmp.eq.s32.totalorder %s29, 0
      %p266 = por %p264, %p265
      %p267 = scmp.ne.s32.totalorder %s259, %s261
      %p268 = scmp.eq.s32.totalorder %s34, 7
      %p269 = por %p267, %p268
      %p270 = scmp.ne.s32.totalorder %s261, %s262
      %p271 = scmp.eq.s32.totalorder %s34, 0
      %p272 = por %p270, %p271
      %p273 = scmp.ne.s32.totalorder %s261, %s262
      %p274 = scmp.eq.s32.totalorder %s35, 7
      %p275 = por %p273, %p274
      %p277 = scmp.ne.s32.totalorder %s262, %s276
      %p278 = scmp.eq.s32.totalorder %s35, 0
      %p279 = por %p277, %p278
      %s281 = sadd.s32 %s280, 1
      %p284 = scmp.eq.s32.totalorder %s29, 7
      %p285 = scmp.ne.s32.totalorder %s280, %s282
      %p286 = scmp.eq.s32.totalorder %s29, 0
      %p287 = por %p285, %p286
      %p288 = scmp.ne.s32.totalorder %s280, %s282
      %p289 = scmp.eq.s32.totalorder %s34, 7
      %p290 = por %p288, %p289
      %p291 = scmp.ne.s32.totalorder %s282, %s283
      %p292 = scmp.eq.s32.totalorder %s34, 0
      %p293 = por %p291, %p292
      %p294 = scmp.ne.s32.totalorder %s282, %s283
      %p295 = scmp.eq.s32.totalorder %s35, 7
      %p296 = por %p294, %p295
      %p298 = scmp.ne.s32.totalorder %s283, %s297
      %p299 = scmp.eq.s32.totalorder %s35, 0
      %p300 = por %p298, %p299
      %s301 = ssub.s32 %s36, %s55
      %s302 = ssub.s32 %s37, %s51
      %s303 = sor.u32 %s301, %s302
      %p304 = scmp.eq.s32.totalorder %s303, 0
      %s306 = sadd.s32 %s305, 1
      %s307 = scalar_select %p304, %s305, %s306
      %p310 = pneg %p304
      %p311 = scmp.eq.s32.totalorder %s29, 7
      %p312 = por %p310, %p311
      %p313 = scmp.ne.s32.totalorder %s305, %s308
      %p314 = scmp.eq.s32.totalorder %s29, 0
      %p315 = por %p313, %p314
      %p316 = scmp.ne.s32.totalorder %s305, %s308
      %p317 = scmp.eq.s32.totalorder %s34, 7
      %p318 = por %p316, %p317
      %p319 = scmp.ne.s32.totalorder %s308, %s309
      %p320 = scmp.eq.s32.totalorder %s34, 0
      %p321 = por %p319, %p320
      %p322 = scmp.ne.s32.totalorder %s308, %s309
      %p323 = scmp.eq.s32.totalorder %s35, 7
      %p324 = por %p322, %p323
      %p326 = scmp.ne.s32.totalorder %s309, %s325
      %p327 = scmp.eq.s32.totalorder %s35, 0
      %p328 = por %p326, %p327
      %p329 = scmp.le.s32.totalorder 1, %s29
      %p330 = scmp.lt.s32.totalorder %s29, 9
      %p331 = pnand %p329, %p330
      %p332 = pneg %p331
      // Predicated region
      $region9: #{_lambda_.1} parent=5 // pred_check
        _
      $region10: #{_lambda_.1} parent=5 // pred_check_branch
        %334 = sbr.rel (%p331) target = $region12
      $region11: #{_lambda_.1} parent=5 // pred_region
        %s335 = ssub.s32 %s29, 1
        // Predicated region
        $region13: #{_lambda_.1} parent=11 // pred_check
          %p336 = pneg %p125
        $region14: #{_lambda_.1} parent=11 // pred_check_branch
          %338 = sbr.rel (%p336) target = $region16
        $region15: #{_lambda_.1} parent=11 // pred_region
          %s340 = ssub.s32 512, 512
          %341 = vsyncadd [#allocation13], %s340
          %s342 = sshll.u32 [#allocation14], 4
          %s343 = int_to_ptr.vmem [resolvable:$true] %s342
          %348 = dma.hbm_to_vmem [thread:$0]  %s2, 512, %s343, [#allocation13], 128, 128, 8
        $region16: #{_lambda_.1} parent=11 // pred_fallthru
          _
        // Predicated region
        $region17: #{_lambda_.1} parent=11 // pred_check
          %p349 = pneg %p146
        $region18: #{_lambda_.1} parent=11 // pred_check_branch
          %351 = sbr.rel (%p349) target = $region20
        $region19: #{_lambda_.1} parent=11 // pred_region
          _
        $region20: #{_lambda_.1} parent=11 // pred_fallthru
          _
        // Predicated region
        $region21: #{_lambda_.1} parent=11 // pred_check
          %p352 = pneg %p167
        $region22: #{_lambda_.1} parent=11 // pred_check_branch
          %354 = sbr.rel (%p352) target = $region24
        $region23: #{_lambda_.1} parent=11 // pred_region
          %s356 = ssub.s32 512, 512
          %357 = vsyncadd [#allocation16], %s356
          %s358 = sshll.u32 [#allocation15], 4
          %s359 = int_to_ptr.vmem [resolvable:$true] %s358
          %364 = dma.hbm_to_vmem [thread:$0]  %s4, 512, %s359, [#allocation16], 128, 128, 8
        $region24: #{_lambda_.1} parent=11 // pred_fallthru
          _
        // Predicated region
        $region25: #{_lambda_.1} parent=11 // pred_check
          %p365 = pneg %p188
        $region26: #{_lambda_.1} parent=11 // pred_check_branch
          %367 = sbr.rel (%p365) target = $region28
        $region27: #{_lambda_.1} parent=11 // pred_region
          _
        $region28: #{_lambda_.1} parent=11 // pred_fallthru
          _
        // Predicated region
        $region29: #{_lambda_.1} parent=11 // pred_check
          %p368 = pneg %p209
        $region30: #{_lambda_.1} parent=11 // pred_check_branch
          %370 = sbr.rel (%p368) target = $region32
        $region31: #{_lambda_.1} parent=11 // pred_region
          %s372 = ssub.s32 512, 512
          %373 = vsyncadd [#allocation16], %s372
          %s374 = sshll.u32 [#allocation17], 4
          %s375 = int_to_ptr.vmem [resolvable:$true] %s374
          %380 = dma.hbm_to_vmem [thread:$0]  %s6, 512, %s375, [#allocation16], 128, 128, 8
        $region32: #{_lambda_.1} parent=11 // pred_fallthru
          _
        // Predicated region
        $region33: #{_lambda_.1} parent=11 // pred_check
          %p381 = pneg %p230
        $region34: #{_lambda_.1} parent=11 // pred_check_branch
          %383 = sbr.rel (%p381) target = $region36
        $region35: #{_lambda_.1} parent=11 // pred_region
          _
        $region36: #{_lambda_.1} parent=11 // pred_fallthru
          _
        // Predicated region
        $region37: #{_lambda_.1} parent=11 // pred_check
          %p384 = pneg %p251
        $region38: #{_lambda_.1} parent=11 // pred_check_branch
          %386 = sbr.rel (%p384) target = $region40
        $region39: #{_lambda_.1} parent=11 // pred_region
          %s388 = ssub.s32 1024, 1024
          %389 = vsyncadd [#allocation19], %s388
          %s390 = sshll.u32 [#allocation18], 4
          %s391 = int_to_ptr.vmem [resolvable:$true] %s390
          %396 = dma.hbm_to_vmem [thread:$0]  %s8, 1024, %s391, [#allocation19], 128, 128, 8
        $region40: #{_lambda_.1} parent=11 // pred_fallthru
          _
        // Predicated region
        $region41: #{_lambda_.1} parent=11 // pred_check
          %p397 = pneg %p272
        $region42: #{_lambda_.1} parent=11 // pred_check_branch
          %399 = sbr.rel (%p397) target = $region44
        $region43: #{_lambda_.1} parent=11 // pred_region
          _
        $region44: #{_lambda_.1} parent=11 // pred_fallthru
          _
        // Predicated region
        $region45: #{_lambda_.1} parent=11 // pred_check
          %p400 = pneg %p293
        $region46: #{_lambda_.1} parent=11 // pred_check_branch
          %402 = sbr.rel (%p400) target = $region48
        $region47: #{_lambda_.1} parent=11 // pred_region
          %s404 = ssub.s32 16, 16
          %405 = vsyncadd [#allocation11], %s404
          %s407 = sshll.u32 %s10, 4
          %s408 = int_to_ptr.vmem [resolvable:$true] %s407
          %410 = dma.vmem_to_smem %s408, 16, [#allocation20], [#allocation11]
        $region48: #{_lambda_.1} parent=11 // pred_fallthru
          _
      $region12: #{_lambda_.1} parent=5 // pred_fallthru
        _
      %p411 = scmp.lt.s32.totalorder %s29, 8
      // Predicated region
      $region49: #{_lambda_.1} parent=5 // pred_check
        %p412 = pneg %p411
      $region50: #{_lambda_.1} parent=5 // pred_check_branch
        %414 = sbr.rel (%p412) target = $region52
      $region51: #{_lambda_.1} parent=5 // pred_region
        // Predicated region
        $region53: #{_lambda_.1} parent=51 // pred_check
          %p415 = pneg %p70
        $region54: #{_lambda_.1} parent=51 // pred_check_branch
          %417 = sbr.rel (%p415) target = $region56
        $region55: #{_lambda_.1} parent=51 // pred_region
          %s418 = sand.u32 %s60, 1
          %s419 = scalar_lea.sflag [#allocation9], %s418
          %s420 = sand.u32 %s60, 1
          %s421 = smul.addr %s420, 128
          %s422 = scalar_lea.vmem [#allocation8], %s421
          %s423 = smul.u32 16, %s37
          %s425 = ssub.s32 2048, 2048
          %426 = vsyncadd %s419, %s425
          %s427 = smul.addr %s36, 32
          %s428 = sadd.s32 %s423, %s427
          %s429 = smul.addr %s428, 128
          %s430 = scalar_lea.hbm %s0, %s429
          %s431 = sshll.u32 %s422, 4
          %s432 = int_to_ptr.vmem [resolvable:$true] %s431
          %437 = dma.hbm_to_vmem [thread:$0]  %s430, 2048, %s432, %s419, 128, 128, 8
        $region56: #{_lambda_.1} parent=51 // pred_fallthru
          _
        // Predicated region
        $region57: #{_lambda_.1} parent=51 // pred_check
          %p438 = pneg %p98
        $region58: #{_lambda_.1} parent=51 // pred_check_branch
          %440 = sbr.rel (%p438) target = $region60
        $region59: #{_lambda_.1} parent=51 // pred_region
          %s441 = sand.u32 %s29, 1
          %s442 = scalar_lea.sflag [#allocation13], %s441
          %s443 = sand.u32 %s88, 1
          %s444 = smul.addr %s443, 128
          %s445 = scalar_lea.vmem [#allocation12], %s444
          %s446 = smul.u32 16, %s38
          %s448 = ssub.s32 2048, 2048
          %449 = vsyncadd %s442, %s448
          %s450 = smul.addr %s36, 32
          %s451 = sadd.s32 %s446, %s450
          %s452 = smul.addr %s451, 128
          %s453 = scalar_lea.hbm %s1, %s452
          %s454 = sshll.u32 %s445, 4
          %s455 = int_to_ptr.vmem [resolvable:$true] %s454
          %460 = dma.hbm_to_vmem [thread:$0]  %s453, 2048, %s455, %s442, 128, 128, 8
        $region60: #{_lambda_.1} parent=51 // pred_fallthru
          _
      $region52: #{_lambda_.1} parent=5 // pred_fallthru
        _
      %p461 = scmp.le.s32.totalorder 1, %s29
      %p462 = scmp.lt.s32.totalorder %s29, 9
      %p463 = pnand %p461, %p462
      %p464 = pneg %p463
      // Predicated region
      $region61: #{_lambda_.1} parent=5 // pred_check
        _
      $region62: #{_lambda_.1} parent=5 // pred_check_branch
        %466 = sbr.rel (%p463) target = $region64
      $region63: #{_lambda_.1} parent=5 // pred_region
        %s467 = ssub.s32 %s29, 1
        %s468 = sand.u32 %s63, 1
        %s469 = scalar_lea.sflag [#allocation9], %s468
        %s470 = sand.u32 %s63, 1
        %s471 = smul.addr %s470, 128
        %s472 = scalar_lea.vmem [#allocation8], %s471
        // Predicated region
        $region65: #{_lambda_.1} parent=63 // pred_check
          %p473 = pneg %p76
        $region66: #{_lambda_.1} parent=63 // pred_check_branch
          %475 = sbr.rel (%p473) target = $region68
        $region67: #{_lambda_.1} parent=63 // pred_region
          %476 = dma.done %s469, 2048
        $region68: #{_lambda_.1} parent=63 // pred_fallthru
          _
        %s477 = sand.u32 %s34, 1
        %s478 = scalar_lea.sflag [#allocation13], %s477
        %s479 = sand.u32 %s91, 1
        %s480 = smul.addr %s479, 128
        %s481 = scalar_lea.vmem [#allocation12], %s480
        // Predicated region
        $region69: #{_lambda_.1} parent=63 // pred_check
          %p482 = pneg %p104
        $region70: #{_lambda_.1} parent=63 // pred_check_branch
          %484 = sbr.rel (%p482) target = $region72
        $region71: #{_lambda_.1} parent=63 // pred_region
          %485 = dma.done %s478, 2048
        $region72: #{_lambda_.1} parent=63 // pred_fallthru
          _
        // Predicated region
        $region73: #{_lambda_.1} parent=63 // pred_check
          %p486 = pneg %p125
        $region74: #{_lambda_.1} parent=63 // pred_check_branch
          %488 = sbr.rel (%p486) target = $region76
        $region75: #{_lambda_.1} parent=63 // pred_region
          %489 = dma.done [#allocation13], 512
        $region76: #{_lambda_.1} parent=63 // pred_fallthru
          _
        // Predicated region
        $region77: #{_lambda_.1} parent=63 // pred_check
          %p490 = pneg %p167
        $region78: #{_lambda_.1} parent=63 // pred_check_branch
          %492 = sbr.rel (%p490) target = $region80
        $region79: #{_lambda_.1} parent=63 // pred_region
          %493 = dma.done [#allocation16], 512
        $region80: #{_lambda_.1} parent=63 // pred_fallthru
          _
        // Predicated region
        $region81: #{_lambda_.1} parent=63 // pred_check
          %p494 = pneg %p209
        $region82: #{_lambda_.1} parent=63 // pred_check_branch
          %496 = sbr.rel (%p494) target = $region84
        $region83: #{_lambda_.1} parent=63 // pred_region
          %497 = dma.done [#allocation16], 512
        $region84: #{_lambda_.1} parent=63 // pred_fallthru
          _
        // Predicated region
        $region85: #{_lambda_.1} parent=63 // pred_check
          %p498 = pneg %p251
        $region86: #{_lambda_.1} parent=63 // pred_check_branch
          %500 = sbr.rel (%p498) target = $region88
        $region87: #{_lambda_.1} parent=63 // pred_region
          %501 = dma.done [#allocation19], 1024
        $region88: #{_lambda_.1} parent=63 // pred_fallthru
          _
        // Predicated region
        $region89: #{_lambda_.1} parent=63 // pred_check
          %p502 = pneg %p293
        $region90: #{_lambda_.1} parent=63 // pred_check_branch
          %504 = sbr.rel (%p502) target = $region92
        $region91: #{_lambda_.1} parent=63 // pred_region
          %505 = dma.done [#allocation11], 16
        $region92: #{_lambda_.1} parent=63 // pred_fallthru
          _
        %506 = sfence
        %s507 = sand.u32 %s63, 1
        %s508 = scalar_lea.sflag [#allocation9], %s507
        %s509 = sand.u32 %s63, 1
        %s510 = smul.addr %s509, 128
        %s511 = scalar_lea.vmem [#allocation8], %s510
        %p512 = pneg %p76
        %p513 = pneg %p73
        %s514 = sand.u32 %s34, 1
        %s515 = scalar_lea.sflag [#allocation13], %s514
        %s516 = sand.u32 %s91, 1
        %s517 = smul.addr %s516, 128
        %s518 = scalar_lea.vmem [#allocation12], %s517
        %p519 = pneg %p104
        %p520 = pneg %p101
        %p521 = pneg %p125
        %p522 = pneg %p122
        %p523 = pneg %p146
        %p524 = pneg %p143
        %p525 = pneg %p167
        %p526 = pneg %p164
        %p527 = pneg %p188
        %p528 = pneg %p185
        %p529 = pneg %p209
        %p530 = pneg %p206
        %p531 = pneg %p230
        %p532 = pneg %p227
        %p533 = pneg %p251
        %p534 = pneg %p248
        %p535 = pneg %p272
        %p536 = pneg %p269
        %p537 = pneg %p293
        %p538 = pneg %p290
        %p539 = pneg %p321
        %p540 = pneg %p318
        %s541 = sand.u32 %s308, 1
        %s542 = scalar_lea.sflag [#allocation10], %s541
        %s543 = sand.u32 %s308, 1
        %s544 = smul.addr %s543, 128
        %s545 = scalar_lea.vmem [#allocation21], %s544
        %s546 = smul.u32 16, %s40
        %s547 = smul.u32 16, %s41
        %s548 = smul.u32 16, %s40
        %p550 = scmp.eq.s32.totalorder %s41, 0
        // Predicated region
        $region93: #{_lambda_.1} parent=63 // pred_check
          %p551 = pneg %p550
        $region94: #{_lambda_.1} parent=63 // pred_check_branch
          %553 = sbr.rel (%p551) target = $region96
        $region95: #{_lambda_.1} parent=63 // pred_region
          %v554 = vld [vmem:[%s472] sm:$0xff]
          %v555 = vld [vmem:[%s472 + $0x8] sm:$0xff]
          %v556 = vld [vmem:[%s472 + $0x10] sm:$0xff]
          %v557 = vld [vmem:[%s472 + $0x18] sm:$0xff]
          %v558 = vld [vmem:[%s472 + $0x20] sm:$0xff]
          %v559 = vld [vmem:[%s472 + $0x28] sm:$0xff]
          %v560 = vld [vmem:[%s472 + $0x30] sm:$0xff]
          %v561 = vld [vmem:[%s472 + $0x38] sm:$0xff]
          %v562 = vld [vmem:[%s472 + $0x40] sm:$0xff]
          %v563 = vld [vmem:[%s472 + $0x48] sm:$0xff]
          %v564 = vld [vmem:[%s472 + $0x50] sm:$0xff]
          %v565 = vld [vmem:[%s472 + $0x58] sm:$0xff]
          %v566 = vld [vmem:[%s472 + $0x60] sm:$0xff]
          %v567 = vld [vmem:[%s472 + $0x68] sm:$0xff]
          %v568 = vld [vmem:[%s472 + $0x70] sm:$0xff]
          %v569 = vld [vmem:[%s472 + $0x78] sm:$0xff]
          %v570 = vpack.c.bf16 %v555, %v554
          %v571 = vpack.c.bf16 %v557, %v556
          %v572 = vpack.c.bf16 %v559, %v558
          %v573 = vpack.c.bf16 %v561, %v560
          %v574 = vpack.c.bf16 %v563, %v562
          %v575 = vpack.c.bf16 %v565, %v564
          %v576 = vpack.c.bf16 %v567, %v566
          %v577 = vpack.c.bf16 %v569, %v568
          %v578 = vld [vmem:[#allocation14] sm:$0xff]
          %v579 = vld [vmem:[#allocation14 + $0x8] sm:$0xff]
          %v580 = vld [vmem:[#allocation14 + $0x10] sm:$0xff]
          %v581 = vld [vmem:[#allocation14 + $0x18] sm:$0xff]
          %v582 = vpack.c.bf16 %v579, %v578
          %v583 = vpack.c.bf16 %v581, %v580
          %v584 = vld [vmem:[%s3] sm:$0x1]
          %v586 = vlaneseq
          %v587 = vshrl.u32 %v586, 7
          %v588 = vsub.s32 0, %v587
          %v589 = vrot.slane %v584, %v588
          %vm591 = vcmask 261120
          %v593 = vsel %vm591, %v570, 0
          %v596 = vsel %vm591, %v571, 0
          %v599 = vsel %vm591, %v572, 0
          %v602 = vsel %vm591, %v573, 0
          %v605 = vsel %vm591, %v574, 0
          %v608 = vsel %vm591, %v575, 0
          %v611 = vsel %vm591, %v576, 0
          %v614 = vsel %vm591, %v577, 0
          %616 = vmatprep.subr.bf16.mxu0 0
          %617 = vmatpush1.bf16.msra.mxu0 %v582
          %618 = vmatprep.subr.bf16.mxu0 0
          %619 = vmatpush1.bf16.msra.mxu0 %v583
          %620 = vmatprep.subr.bf16.mxu0 0
          %621 = vmatpush1.bf16.msra.mxu0 0
          %622 = vmatprep.subr.bf16.mxu0 0
          %623 = vmatpush1.bf16.msra.mxu0 0
          %624 = vmatprep.subr.bf16.mxu0 0
          %625 = vmatpush1.bf16.msra.mxu0 0
          %626 = vmatprep.subr.bf16.mxu0 0
          %627 = vmatpush1.bf16.msra.mxu0 0
          %628 = vmatprep.subr.bf16.mxu0 0
          %629 = vmatpush1.bf16.msra.mxu0 0
          %630 = vmatprep.subr.bf16.mxu0 0
          %631 = vmatpush1.bf16.msra.mxu0 0
          %632 = vmatprep.subr.bf16.mxu0 0
          %633 = vmatpush1.bf16.msra.mxu0 0
          %634 = vmatprep.subr.bf16.mxu0 0
          %635 = vmatpush1.bf16.msra.mxu0 0
          %636 = vmatprep.subr.bf16.mxu0 0
          %637 = vmatpush1.bf16.msra.mxu0 0
          %638 = vmatprep.subr.bf16.mxu0 0
          %639 = vmatpush1.bf16.msra.mxu0 0
          %640 = vmatprep.subr.bf16.mxu0 0
          %641 = vmatpush1.bf16.msra.mxu0 0
          %642 = vmatprep.subr.bf16.mxu0 0
          %643 = vmatpush1.bf16.msra.mxu0 0
          %644 = vmatprep.subr.bf16.mxu0 0
          %645 = vmatpush1.bf16.msra.mxu0 0
          %646 = vmatprep.subr.bf16.mxu0 0
          %647 = vmatpush1.bf16.msra.mxu0 0
          %648 = vmatprep.mubr.bf16.mxu0 0
          %649 = vmatmul.mubr.bf16.gmra.mrb[0].mxu0 %v593
          %v650 = vpop.f32.mrb[0].mxu0
          %v651 = vadd.f32 %v589, %v650
          %v652 = vpop.f32.mrb[0].mxu0
          %v653 = vpop.f32.mrb[0].mxu0
          %v654 = vadd.f32 %v589, %v653
          %v655 = vpop.f32.mrb[0].mxu0
          %656 = vmatprep.mubr.bf16.mxu0 0
          %657 = vmatmul.mubr.bf16.gmra.mrb[0].mxu0 %v596
          %v658 = vpop.f32.mrb[0].mxu0
          %v659 = vadd.f32 %v589, %v658
          %v660 = vpop.f32.mrb[0].mxu0
          %v661 = vpop.f32.mrb[0].mxu0
          %v662 = vadd.f32 %v589, %v661
          %v663 = vpop.f32.mrb[0].mxu0
          %664 = vmatprep.mubr.bf16.mxu0 0
          %665 = vmatmul.mubr.bf16.gmra.mrb[0].mxu0 %v599
          %v666 = vpop.f32.mrb[0].mxu0
          %v667 = vadd.f32 %v589, %v666
          %v668 = vpop.f32.mrb[0].mxu0
          %v669 = vpop.f32.mrb[0].mxu0
          %v670 = vadd.f32 %v589, %v669
          %v671 = vpop.f32.mrb[0].mxu0
          %672 = vmatprep.mubr.bf16.mxu0 0
          %673 = vmatmul.mubr.bf16.gmra.mrb[0].mxu0 %v602
          %v674 = vpop.f32.mrb[0].mxu0
          %v675 = vadd.f32 %v589, %v674
          %v676 = vpop.f32.mrb[0].mxu0
          %v677 = vpop.f32.mrb[0].mxu0
          %v678 = vadd.f32 %v589, %v677
          %v679 = vpop.f32.mrb[0].mxu0
          %680 = vmatprep.mubr.bf16.mxu0 0
          %681 = vmatmul.mubr.bf16.gmra.mrb[0].mxu0 %v605
          %v682 = vpop.f32.mrb[0].mxu0
          %v683 = vadd.f32 %v589, %v682
          %v684 = vpop.f32.mrb[0].mxu0
          %v685 = vpop.f32.mrb[0].mxu0
          %v686 = vadd.f32 %v589, %v685
          %v687 = vpop.f32.mrb[0].mxu0
          %688 = vmatprep.mubr.bf16.mxu0 0
          %689 = vmatmul.mubr.bf16.gmra.mrb[0].mxu0 %v608
          %v690 = vpop.f32.mrb[0].mxu0
          %v691 = vadd.f32 %v589, %v690
          %v692 = vpop.f32.mrb[0].mxu0
          %v693 = vpop.f32.mrb[0].mxu0
          %v694 = vadd.f32 %v589, %v693
          %v695 = vpop.f32.mrb[0].mxu0
          %696 = vmatprep.mubr.bf16.mxu0 0
          %697 = vmatmul.mubr.bf16.gmra.mrb[0].mxu0 %v611
          %v698 = vpop.f32.mrb[0].mxu0
          %v699 = vadd.f32 %v589, %v698
          %v700 = vpop.f32.mrb[0].mxu0
          %v701 = vpop.f32.mrb[0].mxu0
          %v702 = vadd.f32 %v589, %v701
          %v703 = vpop.f32.mrb[0].mxu0
          %704 = vmatprep.mubr.bf16.mxu0 0
          %705 = vmatmul.mubr.bf16.gmra.mrb[0].mxu0 %v614
          %v706 = vpop.f32.mrb[0].mxu0
          %v707 = vadd.f32 %v589, %v706
          %v708 = vpop.f32.mrb[0].mxu0
          %v709 = vpop.f32.mrb[0].mxu0
          %v710 = vadd.f32 %v589, %v709
          %v711 = vpop.f32.mrb[0].mxu0
          %712 = vdwg.mxu0
          %v713 = vpack.c.bf16 %v654, %v651
          %v714 = vpack.c.bf16 %v662, %v659
          %v715 = vpack.c.bf16 %v670, %v667
          %v716 = vpack.c.bf16 %v678, %v675
          %v717 = vpack.c.bf16 %v686, %v683
          %v718 = vpack.c.bf16 %v694, %v691
          %v719 = vpack.c.bf16 %v702, %v699
          %v720 = vpack.c.bf16 %v710, %v707
          %vm721 = vcmask 31744
          %722 = vst.msk [vmem:[#allocation2] sm:$0xff] %vm721, %v713
          %723 = vst.msk [vmem:[#allocation2 + $0x8] sm:$0xff] %vm721, %v714
          %724 = vst.msk [vmem:[#allocation2 + $0x10] sm:$0xff] %vm721, %v715
          %725 = vst.msk [vmem:[#allocation2 + $0x18] sm:$0xff] %vm721, %v716
          %726 = vst.msk [vmem:[#allocation2 + $0x20] sm:$0xff] %vm721, %v717
          %727 = vst.msk [vmem:[#allocation2 + $0x28] sm:$0xff] %vm721, %v718
          %728 = vst.msk [vmem:[#allocation2 + $0x30] sm:$0xff] %vm721, %v719
          %729 = vst.msk [vmem:[#allocation2 + $0x38] sm:$0xff] %vm721, %v720
          %vm730 = vcmask 7168
          %731 = vst.msk [vmem:[#allocation3] sm:$0xff] %vm730, -inf
          %732 = vst.msk [vmem:[#allocation3 + $0x8] sm:$0xff] %vm730, -inf
          %733 = vst.msk [vmem:[#allocation3 + $0x10] sm:$0xff] %vm730, -inf
          %734 = vst.msk [vmem:[#allocation3 + $0x18] sm:$0xff] %vm730, -inf
          %735 = vst.msk [vmem:[#allocation3 + $0x20] sm:$0xff] %vm730, -inf
          %736 = vst.msk [vmem:[#allocation3 + $0x28] sm:$0xff] %vm730, -inf
          %737 = vst.msk [vmem:[#allocation3 + $0x30] sm:$0xff] %vm730, -inf
          %738 = vst.msk [vmem:[#allocation3 + $0x38] sm:$0xff] %vm730, -inf
          %739 = vst.msk [vmem:[#allocation3 + $0x40] sm:$0xff] %vm730, -inf
          %740 = vst.msk [vmem:[#allocation3 + $0x48] sm:$0xff] %vm730, -inf
          %741 = vst.msk [vmem:[#allocation3 + $0x50] sm:$0xff] %vm730, -inf
          %742 = vst.msk [vmem:[#allocation3 + $0x58] sm:$0xff] %vm730, -inf
          %743 = vst.msk [vmem:[#allocation3 + $0x60] sm:$0xff] %vm730, -inf
          %744 = vst.msk [vmem:[#allocation3 + $0x68] sm:$0xff] %vm730, -inf
          %745 = vst.msk [vmem:[#allocation3 + $0x70] sm:$0xff] %vm730, -inf
          %746 = vst.msk [vmem:[#allocation3 + $0x78] sm:$0xff] %vm730, -inf
          %747 = vst.msk [vmem:[#allocation4] sm:$0xff] %vm730, 0.0
          %748 = vst.msk [vmem:[#allocation4 + $0x8] sm:$0xff] %vm730, 0.0
          %749 = vst.msk [vmem:[#allocation4 + $0x10] sm:$0xff] %vm730, 0.0
          %750 = vst.msk [vmem:[#allocation4 + $0x18] sm:$0xff] %vm730, 0.0
          %751 = vst.msk [vmem:[#allocation4 + $0x20] sm:$0xff] %vm730, 0.0
          %752 = vst.msk [vmem:[#allocation4 + $0x28] sm:$0xff] %vm730, 0.0
          %753 = vst.msk [vmem:[#allocation4 + $0x30] sm:$0xff] %vm730, 0.0
          %754 = vst.msk [vmem:[#allocation4 + $0x38] sm:$0xff] %vm730, 0.0
          %755 = vst.msk [vmem:[#allocation4 + $0x40] sm:$0xff] %vm730, 0.0
          %756 = vst.msk [vmem:[#allocation4 + $0x48] sm:$0xff] %vm730, 0.0
          %757 = vst.msk [vmem:[#allocation4 + $0x50] sm:$0xff] %vm730, 0.0
          %758 = vst.msk [vmem:[#allocation4 + $0x58] sm:$0xff] %vm730, 0.0
          %759 = vst.msk [vmem:[#allocation4 + $0x60] sm:$0xff] %vm730, 0.0
          %760 = vst.msk [vmem:[#allocation4 + $0x68] sm:$0xff] %vm730, 0.0
          %761 = vst.msk [vmem:[#allocation4 + $0x70] sm:$0xff] %vm730, 0.0
          %762 = vst.msk [vmem:[#allocation4 + $0x78] sm:$0xff] %vm730, 0.0
          %763 = vst.msk [vmem:[#allocation5] sm:$0xff] %vm591, 0.0
          %764 = vst.msk [vmem:[#allocation5 + $0x8] sm:$0xff] %vm591, 0.0
          %765 = vst.msk [vmem:[#allocation5 + $0x10] sm:$0xff] %vm591, 0.0
          %766 = vst.msk [vmem:[#allocation5 + $0x18] sm:$0xff] %vm591, 0.0
          %767 = vst.msk [vmem:[#allocation5 + $0x20] sm:$0xff] %vm591, 0.0
          %768 = vst.msk [vmem:[#allocation5 + $0x28] sm:$0xff] %vm591, 0.0
          %769 = vst.msk [vmem:[#allocation5 + $0x30] sm:$0xff] %vm591, 0.0
          %770 = vst.msk [vmem:[#allocation5 + $0x38] sm:$0xff] %vm591, 0.0
          %771 = vst.msk [vmem:[#allocation5 + $0x40] sm:$0xff] %vm591, 0.0
          %772 = vst.msk [vmem:[#allocation5 + $0x48] sm:$0xff] %vm591, 0.0
          %773 = vst.msk [vmem:[#allocation5 + $0x50] sm:$0xff] %vm591, 0.0
          %774 = vst.msk [vmem:[#allocation5 + $0x58] sm:$0xff] %vm591, 0.0
          %775 = vst.msk [vmem:[#allocation5 + $0x60] sm:$0xff] %vm591, 0.0
          %776 = vst.msk [vmem:[#allocation5 + $0x68] sm:$0xff] %vm591, 0.0
          %777 = vst.msk [vmem:[#allocation5 + $0x70] sm:$0xff] %vm591, 0.0
          %778 = vst.msk [vmem:[#allocation5 + $0x78] sm:$0xff] %vm591, 0.0
          %vm779 = vcmask 253952
          %780 = vst.msk [vmem:[#allocation6] sm:$0x1] %vm779, 0.0
          %781 = vst.msk [vmem:[#allocation7] sm:$0x1] %vm779, 0.0
        $region96: #{_lambda_.1} parent=63 // pred_fallthru
          _
        %v782 = vld [vmem:[%s481] sm:$0xff]
        %v783 = vld [vmem:[%s481 + $0x8] sm:$0xff]
        %v784 = vld [vmem:[%s481 + $0x10] sm:$0xff]
        %v785 = vld [vmem:[%s481 + $0x18] sm:$0xff]
        %v786 = vld [vmem:[%s481 + $0x20] sm:$0xff]
        %v787 = vld [vmem:[%s481 + $0x28] sm:$0xff]
        %v788 = vld [vmem:[%s481 + $0x30] sm:$0xff]
        %v789 = vld [vmem:[%s481 + $0x38] sm:$0xff]
        %v790 = vld [vmem:[%s481 + $0x40] sm:$0xff]
        %v791 = vld [vmem:[%s481 + $0x48] sm:$0xff]
        %v792 = vld [vmem:[%s481 + $0x50] sm:$0xff]
        %v793 = vld [vmem:[%s481 + $0x58] sm:$0xff]
        %v794 = vld [vmem:[%s481 + $0x60] sm:$0xff]
        %v795 = vld [vmem:[%s481 + $0x68] sm:$0xff]
        %v796 = vld [vmem:[%s481 + $0x70] sm:$0xff]
        %v797 = vld [vmem:[%s481 + $0x78] sm:$0xff]
        %v798 = vpack.c.bf16 %v783, %v782
        %v799 = vpack.c.bf16 %v785, %v784
        %v800 = vpack.c.bf16 %v787, %v786
        %v801 = vpack.c.bf16 %v789, %v788
        %v802 = vpack.c.bf16 %v791, %v790
        %v803 = vpack.c.bf16 %v793, %v792
        %v804 = vpack.c.bf16 %v795, %v794
        %v805 = vpack.c.bf16 %v797, %v796
        %v806 = vld [vmem:[#allocation15] sm:$0xff]
        %v807 = vld [vmem:[#allocation15 + $0x8] sm:$0xff]
        %v808 = vld [vmem:[#allocation15 + $0x10] sm:$0xff]
        %v809 = vld [vmem:[#allocation15 + $0x18] sm:$0xff]
        %v810 = vpack.c.bf16 %v807, %v806
        %v811 = vpack.c.bf16 %v809, %v808
        %v812 = vld [vmem:[%s5] sm:$0x1]
        %v814 = vlaneseq
        %v815 = vshrl.u32 %v814, 7
        %v816 = vsub.s32 0, %v815
        %v817 = vrot.slane %v812, %v816
        %vm819 = vcmask 261120
        %v821 = vsel %vm819, %v798, 0
        %v824 = vsel %vm819, %v799, 0
        %v827 = vsel %vm819, %v800, 0
        %v830 = vsel %vm819, %v801, 0
        %v833 = vsel %vm819, %v802, 0
        %v836 = vsel %vm819, %v803, 0
        %v839 = vsel %vm819, %v804, 0
        %v842 = vsel %vm819, %v805, 0
        %844 = vmatprep.subr.bf16.mxu0 0
        %845 = vmatpush1.bf16.msra.mxu0 %v810
        %846 = vmatprep.subr.bf16.mxu0 0
        %847 = vmatpush1.bf16.msra.mxu0 %v811
        %848 = vmatprep.subr.bf16.mxu0 0
        %849 = vmatpush1.bf16.msra.mxu0 0
        %850 = vmatprep.subr.bf16.mxu0 0
        %851 = vmatpush1.bf16.msra.mxu0 0
        %852 = vmatprep.subr.bf16.mxu0 0
        %853 = vmatpush1.bf16.msra.mxu0 0
        %854 = vmatprep.subr.bf16.mxu0 0
        %855 = vmatpush1.bf16.msra.mxu0 0
        %856 = vmatprep.subr.bf16.mxu0 0
        %857 = vmatpush1.bf16.msra.mxu0 0
        %858 = vmatprep.subr.bf16.mxu0 0
        %859 = vmatpush1.bf16.msra.mxu0 0
        %860 = vmatprep.subr.bf16.mxu0 0
        %861 = vmatpush1.bf16.msra.mxu0 0
        %862 = vmatprep.subr.bf16.mxu0 0
        %863 = vmatpush1.bf16.msra.mxu0 0
        %864 = vmatprep.subr.bf16.mxu0 0
        %865 = vmatpush1.bf16.msra.mxu0 0
        %866 = vmatprep.subr.bf16.mxu0 0
        %867 = vmatpush1.bf16.msra.mxu0 0
        %868 = vmatprep.subr.bf16.mxu0 0
        %869 = vmatpush1.bf16.msra.mxu0 0
        %870 = vmatprep.subr.bf16.mxu0 0
        %871 = vmatpush1.bf16.msra.mxu0 0
        %872 = vmatprep.subr.bf16.mxu0 0
        %873 = vmatpush1.bf16.msra.mxu0 0
        %874 = vmatprep.subr.bf16.mxu0 0
        %875 = vmatpush1.bf16.msra.mxu0 0
        %876 = vmatprep.mubr.bf16.mxu0 0
        %877 = vmatmul.mubr.bf16.gmra.mrb[0].mxu0 %v821
        %v878 = vpop.f32.mrb[0].mxu0
        %v879 = vadd.f32 %v817, %v878
        %v880 = vpop.f32.mrb[0].mxu0
        %v881 = vpop.f32.mrb[0].mxu0
        %v882 = vadd.f32 %v817, %v881
        %v883 = vpop.f32.mrb[0].mxu0
        %884 = vmatprep.mubr.bf16.mxu0 0
        %885 = vmatmul.mubr.bf16.gmra.mrb[0].mxu0 %v824
        %v886 = vpop.f32.mrb[0].mxu0
        %v887 = vadd.f32 %v817, %v886
        %v888 = vpop.f32.mrb[0].mxu0
        %v889 = vpop.f32.mrb[0].mxu0
        %v890 = vadd.f32 %v817, %v889
        %v891 = vpop.f32.mrb[0].mxu0
        %892 = vmatprep.mubr.bf16.mxu0 0
        %893 = vmatmul.mubr.bf16.gmra.mrb[0].mxu0 %v827
        %v894 = vpop.f32.mrb[0].mxu0
        %v895 = vadd.f32 %v817, %v894
        %v896 = vpop.f32.mrb[0].mxu0
        %v897 = vpop.f32.mrb[0].mxu0
        %v898 = vadd.f32 %v817, %v897
        %v899 = vpop.f32.mrb[0].mxu0
        %900 = vmatprep.mubr.bf16.mxu0 0
        %901 = vmatmul.mubr.bf16.gmra.mrb[0].mxu0 %v830
        %v902 = vpop.f32.mrb[0].mxu0
        %v903 = vadd.f32 %v817, %v902
        %v904 = vpop.f32.mrb[0].mxu0
        %v905 = vpop.f32.mrb[0].mxu0
        %v906 = vadd.f32 %v817, %v905
        %v907 = vpop.f32.mrb[0].mxu0
        %908 = vmatprep.mubr.bf16.mxu0 0
        %909 = vmatmul.mubr.bf16.gmra.mrb[0].mxu0 %v833
        %v910 = vpop.f32.mrb[0].mxu0
        %v911 = vadd.f32 %v817, %v910
        %v912 = vpop.f32.mrb[0].mxu0
        %v913 = vpop.f32.mrb[0].mxu0
        %v914 = vadd.f32 %v817, %v913
        %v915 = vpop.f32.mrb[0].mxu0
        %916 = vmatprep.mubr.bf16.mxu0 0
        %917 = vmatmul.mubr.bf16.gmra.mrb[0].mxu0 %v836
        %v918 = vpop.f32.mrb[0].mxu0
        %v919 = vadd.f32 %v817, %v918
        %v920 = vpop.f32.mrb[0].mxu0
        %v921 = vpop.f32.mrb[0].mxu0
        %v922 = vadd.f32 %v817, %v921
        %v923 = vpop.f32.mrb[0].mxu0
        %924 = vmatprep.mubr.bf16.mxu0 0
        %925 = vmatmul.mubr.bf16.gmra.mrb[0].mxu0 %v839
        %v926 = vpop.f32.mrb[0].mxu0
        %v927 = vadd.f32 %v817, %v926
        %v928 = vpop.f32.mrb[0].mxu0
        %v929 = vpop.f32.mrb[0].mxu0
        %v930 = vadd.f32 %v817, %v929
        %v931 = vpop.f32.mrb[0].mxu0
        %932 = vmatprep.mubr.bf16.mxu0 0
        %933 = vmatmul.mubr.bf16.gmra.mrb[0].mxu0 %v842
        %v934 = vpop.f32.mrb[0].mxu0
        %v935 = vadd.f32 %v817, %v934
        %v936 = vpop.f32.mrb[0].mxu0
        %v937 = vpop.f32.mrb[0].mxu0
        %v938 = vadd.f32 %v817, %v937
        %v939 = vpop.f32.mrb[0].mxu0
        %940 = vdwg.mxu0
        %v941 = vld [vmem:[#allocation17] sm:$0xff]
        %v942 = vld [vmem:[#allocation17 + $0x8] sm:$0xff]
        %v943 = vld [vmem:[#allocation17 + $0x10] sm:$0xff]
        %v944 = vld [vmem:[#allocation17 + $0x18] sm:$0xff]
        %v945 = vpack.c.bf16 %v942, %v941
        %v946 = vpack.c.bf16 %v944, %v943
        %v947 = vld [vmem:[%s7] sm:$0x1]
        %v949 = vlaneseq
        %v950 = vshrl.u32 %v949, 7
        %v951 = vsub.s32 0, %v950
        %v952 = vrot.slane %v947, %v951
        %954 = vmatprep.subr.bf16.mxu0 0
        %955 = vmatpush1.bf16.msra.mxu0 %v945
        %956 = vmatprep.subr.bf16.mxu0 0
        %957 = vmatpush1.bf16.msra.mxu0 %v946
        %958 = vmatprep.subr.bf16.mxu0 0
        %959 = vmatpush1.bf16.msra.mxu0 0
        %960 = vmatprep.subr.bf16.mxu0 0
        %961 = vmatpush1.bf16.msra.mxu0 0
        %962 = vmatprep.subr.bf16.mxu0 0
        %963 = vmatpush1.bf16.msra.mxu0 0
        %964 = vmatprep.subr.bf16.mxu0 0
        %965 = vmatpush1.bf16.msra.mxu0 0
        %966 = vmatprep.subr.bf16.mxu0 0
        %967 = vmatpush1.bf16.msra.mxu0 0
        %968 = vmatprep.subr.bf16.mxu0 0
        %969 = vmatpush1.bf16.msra.mxu0 0
        %970 = vmatprep.subr.bf16.mxu0 0
        %971 = vmatpush1.bf16.msra.mxu0 0
        %972 = vmatprep.subr.bf16.mxu0 0
        %973 = vmatpush1.bf16.msra.mxu0 0
        %974 = vmatprep.subr.bf16.mxu0 0
        %975 = vmatpush1.bf16.msra.mxu0 0
        %976 = vmatprep.subr.bf16.mxu0 0
        %977 = vmatpush1.bf16.msra.mxu0 0
        %978 = vmatprep.subr.bf16.mxu0 0
        %979 = vmatpush1.bf16.msra.mxu0 0
        %980 = vmatprep.subr.bf16.mxu0 0
        %981 = vmatpush1.bf16.msra.mxu0 0
        %982 = vmatprep.subr.bf16.mxu0 0
        %983 = vmatpush1.bf16.msra.mxu0 0
        %984 = vmatprep.subr.bf16.mxu0 0
        %985 = vmatpush1.bf16.msra.mxu0 0
        %986 = vmatprep.mubr.bf16.mxu0 0
        %987 = vmatmul.mubr.bf16.gmra.mrb[0].mxu0 %v821
        %v988 = vpop.f32.mrb[0].mxu0
        %v989 = vadd.f32 %v952, %v988
        %v990 = vpop.f32.mrb[0].mxu0
        %v991 = vpop.f32.mrb[0].mxu0
        %v992 = vadd.f32 %v952, %v991
        %v993 = vpop.f32.mrb[0].mxu0
        %994 = vmatprep.mubr.bf16.mxu0 0
        %995 = vmatmul.mubr.bf16.gmra.mrb[0].mxu0 %v824
        %v996 = vpop.f32.mrb[0].mxu0
        %v997 = vadd.f32 %v952, %v996
        %v998 = vpop.f32.mrb[0].mxu0
        %v999 = vpop.f32.mrb[0].mxu0
        %v1000 = vadd.f32 %v952, %v999
        %v1001 = vpop.f32.mrb[0].mxu0
        %1002 = vmatprep.mubr.bf16.mxu0 0
        %1003 = vmatmul.mubr.bf16.gmra.mrb[0].mxu0 %v827
        %v1004 = vpop.f32.mrb[0].mxu0
        %v1005 = vadd.f32 %v952, %v1004
        %v1006 = vpop.f32.mrb[0].mxu0
        %v1007 = vpop.f32.mrb[0].mxu0
        %v1008 = vadd.f32 %v952, %v1007
        %v1009 = vpop.f32.mrb[0].mxu0
        %1010 = vmatprep.mubr.bf16.mxu0 0
        %1011 = vmatmul.mubr.bf16.gmra.mrb[0].mxu0 %v830
        %v1012 = vpop.f32.mrb[0].mxu0
        %v1013 = vadd.f32 %v952, %v1012
        %v1014 = vpop.f32.mrb[0].mxu0
        %v1015 = vpop.f32.mrb[0].mxu0
        %v1016 = vadd.f32 %v952, %v1015
        %v1017 = vpop.f32.mrb[0].mxu0
        %1018 = vmatprep.mubr.bf16.mxu0 0
        %1019 = vmatmul.mubr.bf16.gmra.mrb[0].mxu0 %v833
        %v1020 = vpop.f32.mrb[0].mxu0
        %v1021 = vadd.f32 %v952, %v1020
        %v1022 = vpop.f32.mrb[0].mxu0
        %v1023 = vpop.f32.mrb[0].mxu0
        %v1024 = vadd.f32 %v952, %v1023
        %v1025 = vpop.f32.mrb[0].mxu0
        %1026 = vmatprep.mubr.bf16.mxu0 0
        %1027 = vmatmul.mubr.bf16.gmra.mrb[0].mxu0 %v836
        %v1028 = vpop.f32.mrb[0].mxu0
        %v1029 = vadd.f32 %v952, %v1028
        %v1030 = vpop.f32.mrb[0].mxu0
        %v1031 = vpop.f32.mrb[0].mxu0
        %v1032 = vadd.f32 %v952, %v1031
        %v1033 = vpop.f32.mrb[0].mxu0
        %1034 = vmatprep.mubr.bf16.mxu0 0
        %1035 = vmatmul.mubr.bf16.gmra.mrb[0].mxu0 %v839
        %v1036 = vpop.f32.mrb[0].mxu0
        %v1037 = vadd.f32 %v952, %v1036
        %v1038 = vpop.f32.mrb[0].mxu0
        %v1039 = vpop.f32.mrb[0].mxu0
        %v1040 = vadd.f32 %v952, %v1039
        %v1041 = vpop.f32.mrb[0].mxu0
        %1042 = vmatprep.mubr.bf16.mxu0 0
        %1043 = vmatmul.mubr.bf16.gmra.mrb[0].mxu0 %v842
        %v1044 = vpop.f32.mrb[0].mxu0
        %v1045 = vadd.f32 %v952, %v1044
        %v1046 = vpop.f32.mrb[0].mxu0
        %v1047 = vpop.f32.mrb[0].mxu0
        %v1048 = vadd.f32 %v952, %v1047
        %v1049 = vpop.f32.mrb[0].mxu0
        %1050 = vdwg.mxu0
        %v1051 = vld [vmem:[#allocation2] sm:$0xff]
        %v1052 = vld [vmem:[#allocation2 + $0x8] sm:$0xff]
        %v1053 = vld [vmem:[#allocation2 + $0x10] sm:$0xff]
        %v1054 = vld [vmem:[#allocation2 + $0x18] sm:$0xff]
        %v1055 = vld [vmem:[#allocation2 + $0x20] sm:$0xff]
        %v1056 = vld [vmem:[#allocation2 + $0x28] sm:$0xff]
        %v1057 = vld [vmem:[#allocation2 + $0x30] sm:$0xff]
        %v1058 = vld [vmem:[#allocation2 + $0x38] sm:$0xff]
        %v1059 = vpack.c.bf16 %v882, %v879
        %v1060 = vpack.c.bf16 %v890, %v887
        %v1061 = vpack.c.bf16 %v898, %v895
        %v1062 = vpack.c.bf16 %v906, %v903
        %v1063 = vpack.c.bf16 %v914, %v911
        %v1064 = vpack.c.bf16 %v922, %v919
        %v1065 = vpack.c.bf16 %v930, %v927
        %v1066 = vpack.c.bf16 %v938, %v935
        %vm1067 = vcmask 31744
        %v1069 = vsel %vm1067, %v1051, 0
        %v1072 = vsel %vm1067, %v1052, 0
        %v1075 = vsel %vm1067, %v1053, 0
        %v1078 = vsel %vm1067, %v1054, 0
        %v1081 = vsel %vm1067, %v1055, 0
        %v1084 = vsel %vm1067, %v1056, 0
        %v1087 = vsel %vm1067, %v1057, 0
        %v1090 = vsel %vm1067, %v1058, 0
        %v1093 = vsel %vm1067, %v1059, 0
        %v1096 = vsel %vm1067, %v1060, 0
        %v1099 = vsel %vm1067, %v1061, 0
        %v1102 = vsel %vm1067, %v1062, 0
        %v1105 = vsel %vm1067, %v1063, 0
        %v1108 = vsel %vm1067, %v1064, 0
        %v1111 = vsel %vm1067, %v1065, 0
        %v1114 = vsel %vm1067, %v1066, 0
        %1116 = vmatprep.subr.bf16.mxu0 0
        %1117 = vmatpush1.bf16.xpose.msra.mxu0 %v1093
        %1118 = vmatprep.subr.bf16.mxu0 0
        %1119 = vmatpush1.bf16.xpose.msra.mxu0 %v1096
        %1120 = vmatprep.subr.bf16.mxu0 0
        %1121 = vmatpush1.bf16.xpose.msra.mxu0 %v1099
        %1122 = vmatprep.subr.bf16.mxu0 0
        %1123 = vmatpush1.bf16.xpose.msra.mxu0 %v1102
        %1124 = vmatprep.subr.bf16.mxu0 0
        %1125 = vmatpush1.bf16.xpose.msra.mxu0 %v1105
        %1126 = vmatprep.subr.bf16.mxu0 0
        %1127 = vmatpush1.bf16.xpose.msra.mxu0 %v1108
        %1128 = vmatprep.subr.bf16.mxu0 0
        %1129 = vmatpush1.bf16.xpose.msra.mxu0 %v1111
        %1130 = vmatprep.subr.bf16.mxu0 0
        %1131 = vmatpush1.bf16.xpose.msra.mxu0 %v1114
        %1132 = vmatprep.subr.bf16.mxu0 0
        %1133 = vmatpush1.bf16.xpose.msra.mxu0 0
        %1134 = vmatprep.subr.bf16.mxu0 0
        %1135 = vmatpush1.bf16.xpose.msra.mxu0 0
        %1136 = vmatprep.subr.bf16.mxu0 0
        %1137 = vmatpush1.bf16.xpose.msra.mxu0 0
        %1138 = vmatprep.subr.bf16.mxu0 0
        %1139 = vmatpush1.bf16.xpose.msra.mxu0 0
        %1140 = vmatprep.subr.bf16.mxu0 0
        %1141 = vmatpush1.bf16.xpose.msra.mxu0 0
        %1142 = vmatprep.subr.bf16.mxu0 0
        %1143 = vmatpush1.bf16.xpose.msra.mxu0 0
        %1144 = vmatprep.subr.bf16.mxu0 0
        %1145 = vmatpush1.bf16.xpose.msra.mxu0 0
        %1146 = vmatprep.subr.bf16.mxu0 0
        %1147 = vmatpush1.bf16.xpose.msra.mxu0 0
        %1148 = vmatprep.mubr.bf16.mxu0 0
        %1149 = vmatmul.mubr.bf16.gmra.mrb[0].mxu0 %v1069
        %v1150 = vpop.f32.mrb[0].mxu0
        %v1151 = vadd.f32 0.0, %v1150
        %v1152 = vpop.f32.mrb[0].mxu0
        %v1153 = vpop.f32.mrb[0].mxu0
        %v1154 = vadd.f32 0.0, %v1153
        %v1155 = vpop.f32.mrb[0].mxu0
        %1156 = vmatprep.mubr.bf16.mxu0 0
        %1157 = vmatmul.mubr.bf16.gmra.mrb[0].mxu0 %v1072
        %v1158 = vpop.f32.mrb[0].mxu0
        %v1159 = vadd.f32 0.0, %v1158
        %v1160 = vpop.f32.mrb[0].mxu0
        %v1161 = vpop.f32.mrb[0].mxu0
        %v1162 = vadd.f32 0.0, %v1161
        %v1163 = vpop.f32.mrb[0].mxu0
        %1164 = vmatprep.mubr.bf16.mxu0 0
        %1165 = vmatmul.mubr.bf16.gmra.mrb[0].mxu0 %v1075
        %v1166 = vpop.f32.mrb[0].mxu0
        %v1167 = vadd.f32 0.0, %v1166
        %v1168 = vpop.f32.mrb[0].mxu0
        %v1169 = vpop.f32.mrb[0].mxu0
        %v1170 = vadd.f32 0.0, %v1169
        %v1171 = vpop.f32.mrb[0].mxu0
        %1172 = vmatprep.mubr.bf16.mxu0 0
        %1173 = vmatmul.mubr.bf16.gmra.mrb[0].mxu0 %v1078
        %v1174 = vpop.f32.mrb[0].mxu0
        %v1175 = vadd.f32 0.0, %v1174
        %v1176 = vpop.f32.mrb[0].mxu0
        %v1177 = vpop.f32.mrb[0].mxu0
        %v1178 = vadd.f32 0.0, %v1177
        %v1179 = vpop.f32.mrb[0].mxu0
        %1180 = vmatprep.mubr.bf16.mxu0 0
        %1181 = vmatmul.mubr.bf16.gmra.mrb[0].mxu0 %v1081
        %v1182 = vpop.f32.mrb[0].mxu0
        %v1183 = vadd.f32 0.0, %v1182
        %v1184 = vpop.f32.mrb[0].mxu0
        %v1185 = vpop.f32.mrb[0].mxu0
        %v1186 = vadd.f32 0.0, %v1185
        %v1187 = vpop.f32.mrb[0].mxu0
        %1188 = vmatprep.mubr.bf16.mxu0 0
        %1189 = vmatmul.mubr.bf16.gmra.mrb[0].mxu0 %v1084
        %v1190 = vpop.f32.mrb[0].mxu0
        %v1191 = vadd.f32 0.0, %v1190
        %v1192 = vpop.f32.mrb[0].mxu0
        %v1193 = vpop.f32.mrb[0].mxu0
        %v1194 = vadd.f32 0.0, %v1193
        %v1195 = vpop.f32.mrb[0].mxu0
        %1196 = vmatprep.mubr.bf16.mxu0 0
        %1197 = vmatmul.mubr.bf16.gmra.mrb[0].mxu0 %v1087
        %v1198 = vpop.f32.mrb[0].mxu0
        %v1199 = vadd.f32 0.0, %v1198
        %v1200 = vpop.f32.mrb[0].mxu0
        %v1201 = vpop.f32.mrb[0].mxu0
        %v1202 = vadd.f32 0.0, %v1201
        %v1203 = vpop.f32.mrb[0].mxu0
        %1204 = vmatprep.mubr.bf16.mxu0 0
        %1205 = vmatmul.mubr.bf16.gmra.mrb[0].mxu0 %v1090
        %v1206 = vpop.f32.mrb[0].mxu0
        %v1207 = vadd.f32 0.0, %v1206
        %v1208 = vpop.f32.mrb[0].mxu0
        %v1209 = vpop.f32.mrb[0].mxu0
        %v1210 = vadd.f32 0.0, %v1209
        %v1211 = vpop.f32.mrb[0].mxu0
        %1212 = vdwg.mxu0
        %v1213 = vld [vmem:[#allocation3] sm:$0xff]
        %v1214 = vld [vmem:[#allocation3 + $0x8] sm:$0xff]
        %v1215 = vld [vmem:[#allocation3 + $0x10] sm:$0xff]
        %v1216 = vld [vmem:[#allocation3 + $0x18] sm:$0xff]
        %v1217 = vld [vmem:[#allocation3 + $0x20] sm:$0xff]
        %v1218 = vld [vmem:[#allocation3 + $0x28] sm:$0xff]
        %v1219 = vld [vmem:[#allocation3 + $0x30] sm:$0xff]
        %v1220 = vld [vmem:[#allocation3 + $0x38] sm:$0xff]
        %v1221 = vld [vmem:[#allocation3 + $0x40] sm:$0xff]
        %v1222 = vld [vmem:[#allocation3 + $0x48] sm:$0xff]
        %v1223 = vld [vmem:[#allocation3 + $0x50] sm:$0xff]
        %v1224 = vld [vmem:[#allocation3 + $0x58] sm:$0xff]
        %v1225 = vld [vmem:[#allocation3 + $0x60] sm:$0xff]
        %v1226 = vld [vmem:[#allocation3 + $0x68] sm:$0xff]
        %v1227 = vld [vmem:[#allocation3 + $0x70] sm:$0xff]
        %v1228 = vld [vmem:[#allocation3 + $0x78] sm:$0xff]
        %1229 = vmax.xlane.f32.xlu0 %v1151
        %v1230 = vpop.xlane.xlu0 %1229
        %1231 = vmax.xlane.f32.xlu0 %v1154
        %v1232 = vpop.xlane.xlu0 %1231
        %1233 = vmax.xlane.f32.xlu0 %v1159
        %v1234 = vpop.xlane.xlu0 %1233
        %1235 = vmax.xlane.f32.xlu0 %v1162
        %v1236 = vpop.xlane.xlu0 %1235
        %1237 = vmax.xlane.f32.xlu0 %v1167
        %v1238 = vpop.xlane.xlu0 %1237
        %1239 = vmax.xlane.f32.xlu0 %v1170
        %v1240 = vpop.xlane.xlu0 %1239
        %1241 = vmax.xlane.f32.xlu0 %v1175
        %v1242 = vpop.xlane.xlu0 %1241
        %1243 = vmax.xlane.f32.xlu0 %v1178
        %v1244 = vpop.xlane.xlu0 %1243
        %1245 = vmax.xlane.f32.xlu0 %v1183
        %v1246 = vpop.xlane.xlu0 %1245
        %1247 = vmax.xlane.f32.xlu0 %v1186
        %v1248 = vpop.xlane.xlu0 %1247
        %1249 = vmax.xlane.f32.xlu0 %v1191
        %v1250 = vpop.xlane.xlu0 %1249
        %1251 = vmax.xlane.f32.xlu0 %v1194
        %v1252 = vpop.xlane.xlu0 %1251
        %1253 = vmax.xlane.f32.xlu0 %v1199
        %v1254 = vpop.xlane.xlu0 %1253
        %1255 = vmax.xlane.f32.xlu0 %v1202
        %v1256 = vpop.xlane.xlu0 %1255
        %1257 = vmax.xlane.f32.xlu0 %v1207
        %v1258 = vpop.xlane.xlu0 %1257
        %1259 = vmax.xlane.f32.xlu0 %v1210
        %v1260 = vpop.xlane.xlu0 %1259
        %v1261 = vmax.f32 %v1213, %v1230
        %v1262 = vmax.f32 %v1214, %v1232
        %v1263 = vmax.f32 %v1215, %v1234
        %v1264 = vmax.f32 %v1216, %v1236
        %v1265 = vmax.f32 %v1217, %v1238
        %v1266 = vmax.f32 %v1218, %v1240
        %v1267 = vmax.f32 %v1219, %v1242
        %v1268 = vmax.f32 %v1220, %v1244
        %v1269 = vmax.f32 %v1221, %v1246
        %v1270 = vmax.f32 %v1222, %v1248
        %v1271 = vmax.f32 %v1223, %v1250
        %v1272 = vmax.f32 %v1224, %v1252
        %v1273 = vmax.f32 %v1225, %v1254
        %v1274 = vmax.f32 %v1226, %v1256
        %v1275 = vmax.f32 %v1227, %v1258
        %v1276 = vmax.f32 %v1228, %v1260
        %v1277 = vsub.f32 %v1213, %v1261
        %v1278 = vsub.f32 %v1214, %v1262
        %v1279 = vsub.f32 %v1215, %v1263
        %v1280 = vsub.f32 %v1216, %v1264
        %v1281 = vsub.f32 %v1217, %v1265
        %v1282 = vsub.f32 %v1218, %v1266
        %v1283 = vsub.f32 %v1219, %v1267
        %v1284 = vsub.f32 %v1220, %v1268
        %v1285 = vsub.f32 %v1221, %v1269
        %v1286 = vsub.f32 %v1222, %v1270
        %v1287 = vsub.f32 %v1223, %v1271
        %v1288 = vsub.f32 %v1224, %v1272
        %v1289 = vsub.f32 %v1225, %v1273
        %v1290 = vsub.f32 %v1226, %v1274
        %v1291 = vsub.f32 %v1227, %v1275
        %v1292 = vsub.f32 %v1228, %v1276
        %v1293 = vmul.f32 %v1277, 1.442695
        %v1294 = vpow.pop %v1293
        %v1295 = vmul.f32 %v1278, 1.442695
        %v1296 = vpow.pop %v1295
        %v1297 = vmul.f32 %v1279, 1.442695
        %v1298 = vpow.pop %v1297
        %v1299 = vmul.f32 %v1280, 1.442695
        %v1300 = vpow.pop %v1299
        %v1301 = vmul.f32 %v1281, 1.442695
        %v1302 = vpow.pop %v1301
        %v1303 = vmul.f32 %v1282, 1.442695
        %v1304 = vpow.pop %v1303
        %v1305 = vmul.f32 %v1283, 1.442695
        %v1306 = vpow.pop %v1305
        %v1307 = vmul.f32 %v1284, 1.442695
        %v1308 = vpow.pop %v1307
        %v1309 = vmul.f32 %v1285, 1.442695
        %v1310 = vpow.pop %v1309
        %v1311 = vmul.f32 %v1286, 1.442695
        %v1312 = vpow.pop %v1311
        %v1313 = vmul.f32 %v1287, 1.442695
        %v1314 = vpow.pop %v1313
        %v1315 = vmul.f32 %v1288, 1.442695
        %v1316 = vpow.pop %v1315
        %v1317 = vmul.f32 %v1289, 1.442695
        %v1318 = vpow.pop %v1317
        %v1319 = vmul.f32 %v1290, 1.442695
        %v1320 = vpow.pop %v1319
        %v1321 = vmul.f32 %v1291, 1.442695
        %v1322 = vpow.pop %v1321
        %v1323 = vmul.f32 %v1292, 1.442695
        %v1324 = vpow.pop %v1323
        %1326 = vset.pattern.permute.xlu0 0
        %1327 = vperm.xlu0 %1326, %v1261
        %v1328 = vpop.permute.xlu0 %1327
        %1331 = vset.pattern.permute.xlu0 0
        %1332 = vperm.xlu0 %1331, %v1262
        %v1333 = vpop.permute.xlu0 %1332
        %1336 = vset.pattern.permute.xlu0 0
        %1337 = vperm.xlu0 %1336, %v1263
        %v1338 = vpop.permute.xlu0 %1337
        %1341 = vset.pattern.permute.xlu0 0
        %1342 = vperm.xlu0 %1341, %v1264
        %v1343 = vpop.permute.xlu0 %1342
        %1346 = vset.pattern.permute.xlu0 0
        %1347 = vperm.xlu0 %1346, %v1265
        %v1348 = vpop.permute.xlu0 %1347
        %1351 = vset.pattern.permute.xlu0 0
        %1352 = vperm.xlu0 %1351, %v1266
        %v1353 = vpop.permute.xlu0 %1352
        %1356 = vset.pattern.permute.xlu0 0
        %1357 = vperm.xlu0 %1356, %v1267
        %v1358 = vpop.permute.xlu0 %1357
        %1361 = vset.pattern.permute.xlu0 0
        %1362 = vperm.xlu0 %1361, %v1268
        %v1363 = vpop.permute.xlu0 %1362
        %1366 = vset.pattern.permute.xlu0 0
        %1367 = vperm.xlu0 %1366, %v1269
        %v1368 = vpop.permute.xlu0 %1367
        %1371 = vset.pattern.permute.xlu0 0
        %1372 = vperm.xlu0 %1371, %v1270
        %v1373 = vpop.permute.xlu0 %1372
        %1376 = vset.pattern.permute.xlu0 0
        %1377 = vperm.xlu0 %1376, %v1271
        %v1378 = vpop.permute.xlu0 %1377
        %1381 = vset.pattern.permute.xlu0 0
        %1382 = vperm.xlu0 %1381, %v1272
        %v1383 = vpop.permute.xlu0 %1382
        %1386 = vset.pattern.permute.xlu0 0
        %1387 = vperm.xlu0 %1386, %v1273
        %v1388 = vpop.permute.xlu0 %1387
        %1391 = vset.pattern.permute.xlu0 0
        %1392 = vperm.xlu0 %1391, %v1274
        %v1393 = vpop.permute.xlu0 %1392
        %1396 = vset.pattern.permute.xlu0 0
        %1397 = vperm.xlu0 %1396, %v1275
        %v1398 = vpop.permute.xlu0 %1397
        %1401 = vset.pattern.permute.xlu0 0
        %1402 = vperm.xlu0 %1401, %v1276
        %v1403 = vpop.permute.xlu0 %1402
        %v1405 = vsub.f32 %v1151, %v1328
        %v1406 = vsub.f32 %v1154, %v1333
        %v1407 = vsub.f32 %v1159, %v1338
        %v1408 = vsub.f32 %v1162, %v1343
        %v1409 = vsub.f32 %v1167, %v1348
        %v1410 = vsub.f32 %v1170, %v1353
        %v1411 = vsub.f32 %v1175, %v1358
        %v1412 = vsub.f32 %v1178, %v1363
        %v1413 = vsub.f32 %v1183, %v1368
        %v1414 = vsub.f32 %v1186, %v1373
        %v1415 = vsub.f32 %v1191, %v1378
        %v1416 = vsub.f32 %v1194, %v1383
        %v1417 = vsub.f32 %v1199, %v1388
        %v1418 = vsub.f32 %v1202, %v1393
        %v1419 = vsub.f32 %v1207, %v1398
        %v1420 = vsub.f32 %v1210, %v1403
        %v1421 = vmul.f32 %v1405, 1.442695
        %v1422 = vpow.pop %v1421
        %v1423 = vmul.f32 %v1406, 1.442695
        %v1424 = vpow.pop %v1423
        %v1425 = vmul.f32 %v1407, 1.442695
        %v1426 = vpow.pop %v1425
        %v1427 = vmul.f32 %v1408, 1.442695
        %v1428 = vpow.pop %v1427
        %v1429 = vmul.f32 %v1409, 1.442695
        %v1430 = vpow.pop %v1429
        %v1431 = vmul.f32 %v1410, 1.442695
        %v1432 = vpow.pop %v1431
        %v1433 = vmul.f32 %v1411, 1.442695
        %v1434 = vpow.pop %v1433
        %v1435 = vmul.f32 %v1412, 1.442695
        %v1436 = vpow.pop %v1435
        %v1437 = vmul.f32 %v1413, 1.442695
        %v1438 = vpow.pop %v1437
        %v1439 = vmul.f32 %v1414, 1.442695
        %v1440 = vpow.pop %v1439
        %v1441 = vmul.f32 %v1415, 1.442695
        %v1442 = vpow.pop %v1441
        %v1443 = vmul.f32 %v1416, 1.442695
        %v1444 = vpow.pop %v1443
        %v1445 = vmul.f32 %v1417, 1.442695
        %v1446 = vpow.pop %v1445
        %v1447 = vmul.f32 %v1418, 1.442695
        %v1448 = vpow.pop %v1447
        %v1449 = vmul.f32 %v1419, 1.442695
        %v1450 = vpow.pop %v1449
        %v1451 = vmul.f32 %v1420, 1.442695
        %v1452 = vpow.pop %v1451
        %v1453 = vld [vmem:[#allocation4] sm:$0xff]
        %v1454 = vld [vmem:[#allocation4 + $0x8] sm:$0xff]
        %v1455 = vld [vmem:[#allocation4 + $0x10] sm:$0xff]
        %v1456 = vld [vmem:[#allocation4 + $0x18] sm:$0xff]
        %v1457 = vld [vmem:[#allocation4 + $0x20] sm:$0xff]
        %v1458 = vld [vmem:[#allocation4 + $0x28] sm:$0xff]
        %v1459 = vld [vmem:[#allocation4 + $0x30] sm:$0xff]
        %v1460 = vld [vmem:[#allocation4 + $0x38] sm:$0xff]
        %v1461 = vld [vmem:[#allocation4 + $0x40] sm:$0xff]
        %v1462 = vld [vmem:[#allocation4 + $0x48] sm:$0xff]
        %v1463 = vld [vmem:[#allocation4 + $0x50] sm:$0xff]
        %v1464 = vld [vmem:[#allocation4 + $0x58] sm:$0xff]
        %v1465 = vld [vmem:[#allocation4 + $0x60] sm:$0xff]
        %v1466 = vld [vmem:[#allocation4 + $0x68] sm:$0xff]
        %v1467 = vld [vmem:[#allocation4 + $0x70] sm:$0xff]
        %v1468 = vld [vmem:[#allocation4 + $0x78] sm:$0xff]
        %v1469 = vmul.f32 %v1294, %v1453
        %v1470 = vmul.f32 %v1296, %v1454
        %v1471 = vmul.f32 %v1298, %v1455
        %v1472 = vmul.f32 %v1300, %v1456
        %v1473 = vmul.f32 %v1302, %v1457
        %v1474 = vmul.f32 %v1304, %v1458
        %v1475 = vmul.f32 %v1306, %v1459
        %v1476 = vmul.f32 %v1308, %v1460
        %v1477 = vmul.f32 %v1310, %v1461
        %v1478 = vmul.f32 %v1312, %v1462
        %v1479 = vmul.f32 %v1314, %v1463
        %v1480 = vmul.f32 %v1316, %v1464
        %v1481 = vmul.f32 %v1318, %v1465
        %v1482 = vmul.f32 %v1320, %v1466
        %v1483 = vmul.f32 %v1322, %v1467
        %v1484 = vmul.f32 %v1324, %v1468
        %1485 = vadd.xlane.f32.xlu0 %v1422
        %v1486 = vpop.xlane.xlu0 %1485
        %1487 = vadd.xlane.f32.xlu0 %v1424
        %v1488 = vpop.xlane.xlu0 %1487
        %1489 = vadd.xlane.f32.xlu0 %v1426
        %v1490 = vpop.xlane.xlu0 %1489
        %1491 = vadd.xlane.f32.xlu0 %v1428
        %v1492 = vpop.xlane.xlu0 %1491
        %1493 = vadd.xlane.f32.xlu0 %v1430
        %v1494 = vpop.xlane.xlu0 %1493
        %1495 = vadd.xlane.f32.xlu0 %v1432
        %v1496 = vpop.xlane.xlu0 %1495
        %1497 = vadd.xlane.f32.xlu0 %v1434
        %v1498 = vpop.xlane.xlu0 %1497
        %1499 = vadd.xlane.f32.xlu0 %v1436
        %v1500 = vpop.xlane.xlu0 %1499
        %1501 = vadd.xlane.f32.xlu0 %v1438
        %v1502 = vpop.xlane.xlu0 %1501
        %1503 = vadd.xlane.f32.xlu0 %v1440
        %v1504 = vpop.xlane.xlu0 %1503
        %1505 = vadd.xlane.f32.xlu0 %v1442
        %v1506 = vpop.xlane.xlu0 %1505
        %1507 = vadd.xlane.f32.xlu0 %v1444
        %v1508 = vpop.xlane.xlu0 %1507
        %1509 = vadd.xlane.f32.xlu0 %v1446
        %v1510 = vpop.xlane.xlu0 %1509
        %1511 = vadd.xlane.f32.xlu0 %v1448
        %v1512 = vpop.xlane.xlu0 %1511
        %1513 = vadd.xlane.f32.xlu0 %v1450
        %v1514 = vpop.xlane.xlu0 %1513
        %1515 = vadd.xlane.f32.xlu0 %v1452
        %v1516 = vpop.xlane.xlu0 %1515
        %v1517 = vadd.f32 %v1469, %v1486
        %v1518 = vadd.f32 %v1470, %v1488
        %v1519 = vadd.f32 %v1471, %v1490
        %v1520 = vadd.f32 %v1472, %v1492
        %v1521 = vadd.f32 %v1473, %v1494
        %v1522 = vadd.f32 %v1474, %v1496
        %v1523 = vadd.f32 %v1475, %v1498
        %v1524 = vadd.f32 %v1476, %v1500
        %v1525 = vadd.f32 %v1477, %v1502
        %v1526 = vadd.f32 %v1478, %v1504
        %v1527 = vadd.f32 %v1479, %v1506
        %v1528 = vadd.f32 %v1480, %v1508
        %v1529 = vadd.f32 %v1481, %v1510
        %v1530 = vadd.f32 %v1482, %v1512
        %v1531 = vadd.f32 %v1483, %v1514
        %v1532 = vadd.f32 %v1484, %v1516
        %vm1533 = vcmask 7168
        %1534 = vst.msk [vmem:[#allocation4] sm:$0xff] %vm1533, %v1517
        %1535 = vst.msk [vmem:[#allocation4 + $0x8] sm:$0xff] %vm1533, %v1518
        %1536 = vst.msk [vmem:[#allocation4 + $0x10] sm:$0xff] %vm1533, %v1519
        %1537 = vst.msk [vmem:[#allocation4 + $0x18] sm:$0xff] %vm1533, %v1520
        %1538 = vst.msk [vmem:[#allocation4 + $0x20] sm:$0xff] %vm1533, %v1521
        %1539 = vst.msk [vmem:[#allocation4 + $0x28] sm:$0xff] %vm1533, %v1522
        %1540 = vst.msk [vmem:[#allocation4 + $0x30] sm:$0xff] %vm1533, %v1523
        %1541 = vst.msk [vmem:[#allocation4 + $0x38] sm:$0xff] %vm1533, %v1524
        %1542 = vst.msk [vmem:[#allocation4 + $0x40] sm:$0xff] %vm1533, %v1525
        %1543 = vst.msk [vmem:[#allocation4 + $0x48] sm:$0xff] %vm1533, %v1526
        %1544 = vst.msk [vmem:[#allocation4 + $0x50] sm:$0xff] %vm1533, %v1527
        %1545 = vst.msk [vmem:[#allocation4 + $0x58] sm:$0xff] %vm1533, %v1528
        %1546 = vst.msk [vmem:[#allocation4 + $0x60] sm:$0xff] %vm1533, %v1529
        %1547 = vst.msk [vmem:[#allocation4 + $0x68] sm:$0xff] %vm1533, %v1530
        %1548 = vst.msk [vmem:[#allocation4 + $0x70] sm:$0xff] %vm1533, %v1531
        %1549 = vst.msk [vmem:[#allocation4 + $0x78] sm:$0xff] %vm1533, %v1532
        %v1550 = vld [vmem:[#allocation5] sm:$0xff]
        %v1551 = vld [vmem:[#allocation5 + $0x8] sm:$0xff]
        %v1552 = vld [vmem:[#allocation5 + $0x10] sm:$0xff]
        %v1553 = vld [vmem:[#allocation5 + $0x18] sm:$0xff]
        %v1554 = vld [vmem:[#allocation5 + $0x20] sm:$0xff]
        %v1555 = vld [vmem:[#allocation5 + $0x28] sm:$0xff]
        %v1556 = vld [vmem:[#allocation5 + $0x30] sm:$0xff]
        %v1557 = vld [vmem:[#allocation5 + $0x38] sm:$0xff]
        %v1558 = vld [vmem:[#allocation5 + $0x40] sm:$0xff]
        %v1559 = vld [vmem:[#allocation5 + $0x48] sm:$0xff]
        %v1560 = vld [vmem:[#allocation5 + $0x50] sm:$0xff]
        %v1561 = vld [vmem:[#allocation5 + $0x58] sm:$0xff]
        %v1562 = vld [vmem:[#allocation5 + $0x60] sm:$0xff]
        %v1563 = vld [vmem:[#allocation5 + $0x68] sm:$0xff]
        %v1564 = vld [vmem:[#allocation5 + $0x70] sm:$0xff]
        %v1565 = vld [vmem:[#allocation5 + $0x78] sm:$0xff]
        %1567 = vset.pattern.permute.xlu0 0
        %1568 = vperm.xlu0 %1567, %v1294
        %v1569 = vpop.permute.xlu0 %1568
        %1572 = vset.pattern.permute.xlu0 0
        %1573 = vperm.xlu0 %1572, %v1296
        %v1574 = vpop.permute.xlu0 %1573
        %1577 = vset.pattern.permute.xlu0 0
        %1578 = vperm.xlu0 %1577, %v1298
        %v1579 = vpop.permute.xlu0 %1578
        %1582 = vset.pattern.permute.xlu0 0
        %1583 = vperm.xlu0 %1582, %v1300
        %v1584 = vpop.permute.xlu0 %1583
        %1587 = vset.pattern.permute.xlu0 0
        %1588 = vperm.xlu0 %1587, %v1302
        %v1589 = vpop.permute.xlu0 %1588
        %1592 = vset.pattern.permute.xlu0 0
        %1593 = vperm.xlu0 %1592, %v1304
        %v1594 = vpop.permute.xlu0 %1593
        %1597 = vset.pattern.permute.xlu0 0
        %1598 = vperm.xlu0 %1597, %v1306
        %v1599 = vpop.permute.xlu0 %1598
        %1602 = vset.pattern.permute.xlu0 0
        %1603 = vperm.xlu0 %1602, %v1308
        %v1604 = vpop.permute.xlu0 %1603
        %1607 = vset.pattern.permute.xlu0 0
        %1608 = vperm.xlu0 %1607, %v1310
        %v1609 = vpop.permute.xlu0 %1608
        %1612 = vset.pattern.permute.xlu0 0
        %1613 = vperm.xlu0 %1612, %v1312
        %v1614 = vpop.permute.xlu0 %1613
        %1617 = vset.pattern.permute.xlu0 0
        %1618 = vperm.xlu0 %1617, %v1314
        %v1619 = vpop.permute.xlu0 %1618
        %1622 = vset.pattern.permute.xlu0 0
        %1623 = vperm.xlu0 %1622, %v1316
        %v1624 = vpop.permute.xlu0 %1623
        %1627 = vset.pattern.permute.xlu0 0
        %1628 = vperm.xlu0 %1627, %v1318
        %v1629 = vpop.permute.xlu0 %1628
        %1632 = vset.pattern.permute.xlu0 0
        %1633 = vperm.xlu0 %1632, %v1320
        %v1634 = vpop.permute.xlu0 %1633
        %1637 = vset.pattern.permute.xlu0 0
        %1638 = vperm.xlu0 %1637, %v1322
        %v1639 = vpop.permute.xlu0 %1638
        %1642 = vset.pattern.permute.xlu0 0
        %1643 = vperm.xlu0 %1642, %v1324
        %v1644 = vpop.permute.xlu0 %1643
        %v1646 = vmul.f32 %v1569, %v1550
        %v1647 = vmul.f32 %v1574, %v1551
        %v1648 = vmul.f32 %v1579, %v1552
        %v1649 = vmul.f32 %v1584, %v1553
        %v1650 = vmul.f32 %v1589, %v1554
        %v1651 = vmul.f32 %v1594, %v1555
        %v1652 = vmul.f32 %v1599, %v1556
        %v1653 = vmul.f32 %v1604, %v1557
        %v1654 = vmul.f32 %v1609, %v1558
        %v1655 = vmul.f32 %v1614, %v1559
        %v1656 = vmul.f32 %v1619, %v1560
        %v1657 = vmul.f32 %v1624, %v1561
        %v1658 = vmul.f32 %v1629, %v1562
        %v1659 = vmul.f32 %v1634, %v1563
        %v1660 = vmul.f32 %v1639, %v1564
        %v1661 = vmul.f32 %v1644, %v1565
        %v1662 = vpack.c.bf16 %v1424, %v1422
        %v1663 = vpack.c.bf16 %v1428, %v1426
        %v1664 = vpack.c.bf16 %v1432, %v1430
        %v1665 = vpack.c.bf16 %v1436, %v1434
        %v1666 = vpack.c.bf16 %v1440, %v1438
        %v1667 = vpack.c.bf16 %v1444, %v1442
        %v1668 = vpack.c.bf16 %v1448, %v1446
        %v1669 = vpack.c.bf16 %v1452, %v1450
        %v1670 = vpack.c.bf16 %v992, %v989
        %v1671 = vpack.c.bf16 %v1000, %v997
        %v1672 = vpack.c.bf16 %v1008, %v1005
        %v1673 = vpack.c.bf16 %v1016, %v1013
        %v1674 = vpack.c.bf16 %v1024, %v1021
        %v1675 = vpack.c.bf16 %v1032, %v1029
        %v1676 = vpack.c.bf16 %v1040, %v1037
        %v1677 = vpack.c.bf16 %v1048, %v1045
        %1678 = vmatprep.subr.bf16.mxu0 0
        %1679 = vmatpush1.bf16.msra.mxu0 %v1670
        %1680 = vmatprep.subr.bf16.mxu0 0
        %1681 = vmatpush1.bf16.msra.mxu0 %v1671
        %1682 = vmatprep.subr.bf16.mxu0 0
        %1683 = vmatpush1.bf16.msra.mxu0 %v1672
        %1684 = vmatprep.subr.bf16.mxu0 0
        %1685 = vmatpush1.bf16.msra.mxu0 %v1673
        %1686 = vmatprep.subr.bf16.mxu0 0
        %1687 = vmatpush1.bf16.msra.mxu0 %v1674
        %1688 = vmatprep.subr.bf16.mxu0 0
        %1689 = vmatpush1.bf16.msra.mxu0 %v1675
        %1690 = vmatprep.subr.bf16.mxu0 0
        %1691 = vmatpush1.bf16.msra.mxu0 %v1676
        %1692 = vmatprep.subr.bf16.mxu0 0
        %1693 = vmatpush1.bf16.msra.mxu0 %v1677
        %1694 = vmatprep.subr.bf16.mxu0 0
        %1695 = vmatpush1.bf16.msra.mxu0 0
        %1696 = vmatprep.subr.bf16.mxu0 0
        %1697 = vmatpush1.bf16.msra.mxu0 0
        %1698 = vmatprep.subr.bf16.mxu0 0
        %1699 = vmatpush1.bf16.msra.mxu0 0
        %1700 = vmatprep.subr.bf16.mxu0 0
        %1701 = vmatpush1.bf16.msra.mxu0 0
        %1702 = vmatprep.subr.bf16.mxu0 0
        %1703 = vmatpush1.bf16.msra.mxu0 0
        %1704 = vmatprep.subr.bf16.mxu0 0
        %1705 = vmatpush1.bf16.msra.mxu0 0
        %1706 = vmatprep.subr.bf16.mxu0 0
        %1707 = vmatpush1.bf16.msra.mxu0 0
        %1708 = vmatprep.subr.bf16.mxu0 0
        %1709 = vmatpush1.bf16.msra.mxu0 0
        %1710 = vmatprep.mubr.bf16.mxu0 0
        %1711 = vmatmul.mubr.bf16.gmra.mrb[0].mxu0 %v1662
        %v1712 = vpop.f32.mrb[0].mxu0
        %v1713 = vadd.f32 0.0, %v1712
        %v1714 = vpop.f32.mrb[0].mxu0
        %v1715 = vpop.f32.mrb[0].mxu0
        %v1716 = vadd.f32 0.0, %v1715
        %v1717 = vpop.f32.mrb[0].mxu0
        %1718 = vmatprep.mubr.bf16.mxu0 0
        %1719 = vmatmul.mubr.bf16.gmra.mrb[0].mxu0 %v1663
        %v1720 = vpop.f32.mrb[0].mxu0
        %v1721 = vadd.f32 0.0, %v1720
        %v1722 = vpop.f32.mrb[0].mxu0
        %v1723 = vpop.f32.mrb[0].mxu0
        %v1724 = vadd.f32 0.0, %v1723
        %v1725 = vpop.f32.mrb[0].mxu0
        %1726 = vmatprep.mubr.bf16.mxu0 0
        %1727 = vmatmul.mubr.bf16.gmra.mrb[0].mxu0 %v1664
        %v1728 = vpop.f32.mrb[0].mxu0
        %v1729 = vadd.f32 0.0, %v1728
        %v1730 = vpop.f32.mrb[0].mxu0
        %v1731 = vpop.f32.mrb[0].mxu0
        %v1732 = vadd.f32 0.0, %v1731
        %v1733 = vpop.f32.mrb[0].mxu0
        %1734 = vmatprep.mubr.bf16.mxu0 0
        %1735 = vmatmul.mubr.bf16.gmra.mrb[0].mxu0 %v1665
        %v1736 = vpop.f32.mrb[0].mxu0
        %v1737 = vadd.f32 0.0, %v1736
        %v1738 = vpop.f32.mrb[0].mxu0
        %v1739 = vpop.f32.mrb[0].mxu0
        %v1740 = vadd.f32 0.0, %v1739
        %v1741 = vpop.f32.mrb[0].mxu0
        %1742 = vmatprep.mubr.bf16.mxu0 0
        %1743 = vmatmul.mubr.bf16.gmra.mrb[0].mxu0 %v1666
        %v1744 = vpop.f32.mrb[0].mxu0
        %v1745 = vadd.f32 0.0, %v1744
        %v1746 = vpop.f32.mrb[0].mxu0
        %v1747 = vpop.f32.mrb[0].mxu0
        %v1748 = vadd.f32 0.0, %v1747
        %v1749 = vpop.f32.mrb[0].mxu0
        %1750 = vmatprep.mubr.bf16.mxu0 0
        %1751 = vmatmul.mubr.bf16.gmra.mrb[0].mxu0 %v1667
        %v1752 = vpop.f32.mrb[0].mxu0
        %v1753 = vadd.f32 0.0, %v1752
        %v1754 = vpop.f32.mrb[0].mxu0
        %v1755 = vpop.f32.mrb[0].mxu0
        %v1756 = vadd.f32 0.0, %v1755
        %v1757 = vpop.f32.mrb[0].mxu0
        %1758 = vmatprep.mubr.bf16.mxu0 0
        %1759 = vmatmul.mubr.bf16.gmra.mrb[0].mxu0 %v1668
        %v1760 = vpop.f32.mrb[0].mxu0
        %v1761 = vadd.f32 0.0, %v1760
        %v1762 = vpop.f32.mrb[0].mxu0
        %v1763 = vpop.f32.mrb[0].mxu0
        %v1764 = vadd.f32 0.0, %v1763
        %v1765 = vpop.f32.mrb[0].mxu0
        %1766 = vmatprep.mubr.bf16.mxu0 0
        %1767 = vmatmul.mubr.bf16.gmra.mrb[0].mxu0 %v1669
        %v1768 = vpop.f32.mrb[0].mxu0
        %v1769 = vadd.f32 0.0, %v1768
        %v1770 = vpop.f32.mrb[0].mxu0
        %v1771 = vpop.f32.mrb[0].mxu0
        %v1772 = vadd.f32 0.0, %v1771
        %v1773 = vpop.f32.mrb[0].mxu0
        %1774 = vdwg.mxu0
        %v1775 = vadd.f32 %v1646, %v1713
        %v1776 = vadd.f32 %v1647, %v1716
        %v1777 = vadd.f32 %v1648, %v1721
        %v1778 = vadd.f32 %v1649, %v1724
        %v1779 = vadd.f32 %v1650, %v1729
        %v1780 = vadd.f32 %v1651, %v1732
        %v1781 = vadd.f32 %v1652, %v1737
        %v1782 = vadd.f32 %v1653, %v1740
        %v1783 = vadd.f32 %v1654, %v1745
        %v1784 = vadd.f32 %v1655, %v1748
        %v1785 = vadd.f32 %v1656, %v1753
        %v1786 = vadd.f32 %v1657, %v1756
        %v1787 = vadd.f32 %v1658, %v1761
        %v1788 = vadd.f32 %v1659, %v1764
        %v1789 = vadd.f32 %v1660, %v1769
        %v1790 = vadd.f32 %v1661, %v1772
        %1791 = vst.msk [vmem:[#allocation5] sm:$0xff] %vm819, %v1775
        %1792 = vst.msk [vmem:[#allocation5 + $0x8] sm:$0xff] %vm819, %v1776
        %1793 = vst.msk [vmem:[#allocation5 + $0x10] sm:$0xff] %vm819, %v1777
        %1794 = vst.msk [vmem:[#allocation5 + $0x18] sm:$0xff] %vm819, %v1778
        %1795 = vst.msk [vmem:[#allocation5 + $0x20] sm:$0xff] %vm819, %v1779
        %1796 = vst.msk [vmem:[#allocation5 + $0x28] sm:$0xff] %vm819, %v1780
        %1797 = vst.msk [vmem:[#allocation5 + $0x30] sm:$0xff] %vm819, %v1781
        %1798 = vst.msk [vmem:[#allocation5 + $0x38] sm:$0xff] %vm819, %v1782
        %1799 = vst.msk [vmem:[#allocation5 + $0x40] sm:$0xff] %vm819, %v1783
        %1800 = vst.msk [vmem:[#allocation5 + $0x48] sm:$0xff] %vm819, %v1784
        %1801 = vst.msk [vmem:[#allocation5 + $0x50] sm:$0xff] %vm819, %v1785
        %1802 = vst.msk [vmem:[#allocation5 + $0x58] sm:$0xff] %vm819, %v1786
        %1803 = vst.msk [vmem:[#allocation5 + $0x60] sm:$0xff] %vm819, %v1787
        %1804 = vst.msk [vmem:[#allocation5 + $0x68] sm:$0xff] %vm819, %v1788
        %1805 = vst.msk [vmem:[#allocation5 + $0x70] sm:$0xff] %vm819, %v1789
        %1806 = vst.msk [vmem:[#allocation5 + $0x78] sm:$0xff] %vm819, %v1790
        %1807 = vst.msk [vmem:[#allocation3] sm:$0xff] %vm1533, %v1261
        %1808 = vst.msk [vmem:[#allocation3 + $0x8] sm:$0xff] %vm1533, %v1262
        %1809 = vst.msk [vmem:[#allocation3 + $0x10] sm:$0xff] %vm1533, %v1263
        %1810 = vst.msk [vmem:[#allocation3 + $0x18] sm:$0xff] %vm1533, %v1264
        %1811 = vst.msk [vmem:[#allocation3 + $0x20] sm:$0xff] %vm1533, %v1265
        %1812 = vst.msk [vmem:[#allocation3 + $0x28] sm:$0xff] %vm1533, %v1266
        %1813 = vst.msk [vmem:[#allocation3 + $0x30] sm:$0xff] %vm1533, %v1267
        %1814 = vst.msk [vmem:[#allocation3 + $0x38] sm:$0xff] %vm1533, %v1268
        %1815 = vst.msk [vmem:[#allocation3 + $0x40] sm:$0xff] %vm1533, %v1269
        %1816 = vst.msk [vmem:[#allocation3 + $0x48] sm:$0xff] %vm1533, %v1270
        %1817 = vst.msk [vmem:[#allocation3 + $0x50] sm:$0xff] %vm1533, %v1271
        %1818 = vst.msk [vmem:[#allocation3 + $0x58] sm:$0xff] %vm1533, %v1272
        %1819 = vst.msk [vmem:[#allocation3 + $0x60] sm:$0xff] %vm1533, %v1273
        %1820 = vst.msk [vmem:[#allocation3 + $0x68] sm:$0xff] %vm1533, %v1274
        %1821 = vst.msk [vmem:[#allocation3 + $0x70] sm:$0xff] %vm1533, %v1275
        %1822 = vst.msk [vmem:[#allocation3 + $0x78] sm:$0xff] %vm1533, %v1276
        %v1823 = vld [vmem:[#allocation6] sm:$0x1]
        %v1824 = vsel %vm819, %v782, 0.0
        %v1825 = vsel %vm819, %v783, 0.0
        %v1826 = vadd.f32 %v1824, %v1825
        %v1827 = vsel %vm819, %v784, 0.0
        %v1828 = vadd.f32 %v1826, %v1827
        %v1829 = vsel %vm819, %v785, 0.0
        %v1830 = vadd.f32 %v1828, %v1829
        %v1831 = vsel %vm819, %v786, 0.0
        %v1832 = vadd.f32 %v1830, %v1831
        %v1833 = vsel %vm819, %v787, 0.0
        %v1834 = vadd.f32 %v1832, %v1833
        %v1835 = vsel %vm819, %v788, 0.0
        %v1836 = vadd.f32 %v1834, %v1835
        %v1837 = vsel %vm819, %v789, 0.0
        %v1838 = vadd.f32 %v1836, %v1837
        %v1839 = vsel %vm819, %v790, 0.0
        %v1840 = vadd.f32 %v1838, %v1839
        %v1841 = vsel %vm819, %v791, 0.0
        %v1842 = vadd.f32 %v1840, %v1841
        %v1843 = vsel %vm819, %v792, 0.0
        %v1844 = vadd.f32 %v1842, %v1843
        %v1845 = vsel %vm819, %v793, 0.0
        %v1846 = vadd.f32 %v1844, %v1845
        %v1847 = vsel %vm819, %v794, 0.0
        %v1848 = vadd.f32 %v1846, %v1847
        %v1849 = vsel %vm819, %v795, 0.0
        %v1850 = vadd.f32 %v1848, %v1849
        %v1851 = vsel %vm819, %v796, 0.0
        %v1852 = vadd.f32 %v1850, %v1851
        %v1853 = vsel %vm819, %v797, 0.0
        %v1854 = vadd.f32 %v1852, %v1853
        %v1855 = vrot.slane %v1854, 4
        %v1856 = vadd.f32 %v1854, %v1855
        %v1857 = vrot.slane %v1856, 2
        %v1858 = vadd.f32 %v1856, %v1857
        %v1859 = vrot.slane %v1858, 1
        %v1860 = vadd.f32 %v1858, %v1859
        %v1861 = vadd.f32 %v1823, %v1860
        %vm1862 = vcmask 253952
        %1863 = vst.msk [vmem:[#allocation6] sm:$0x1] %vm1862, %v1861
        %v1864 = vld [vmem:[#allocation7] sm:$0x1]
        %v1865 = vmul.f32 %v782, %v782
        %v1866 = vmul.f32 %v783, %v783
        %v1867 = vmul.f32 %v784, %v784
        %v1868 = vmul.f32 %v785, %v785
        %v1869 = vmul.f32 %v786, %v786
        %v1870 = vmul.f32 %v787, %v787
        %v1871 = vmul.f32 %v788, %v788
        %v1872 = vmul.f32 %v789, %v789
        %v1873 = vmul.f32 %v790, %v790
        %v1874 = vmul.f32 %v791, %v791
        %v1875 = vmul.f32 %v792, %v792
        %v1876 = vmul.f32 %v793, %v793
        %v1877 = vmul.f32 %v794, %v794
        %v1878 = vmul.f32 %v795, %v795
        %v1879 = vmul.f32 %v796, %v796
        %v1880 = vmul.f32 %v797, %v797
        %v1881 = vsel %vm819, %v1865, 0.0
        %v1882 = vsel %vm819, %v1866, 0.0
        %v1883 = vadd.f32 %v1881, %v1882
        %v1884 = vsel %vm819, %v1867, 0.0
        %v1885 = vadd.f32 %v1883, %v1884
        %v1886 = vsel %vm819, %v1868, 0.0
        %v1887 = vadd.f32 %v1885, %v1886
        %v1888 = vsel %vm819, %v1869, 0.0
        %v1889 = vadd.f32 %v1887, %v1888
        %v1890 = vsel %vm819, %v1870, 0.0
        %v1891 = vadd.f32 %v1889, %v1890
        %v1892 = vsel %vm819, %v1871, 0.0
        %v1893 = vadd.f32 %v1891, %v1892
        %v1894 = vsel %vm819, %v1872, 0.0
        %v1895 = vadd.f32 %v1893, %v1894
        %v1896 = vsel %vm819, %v1873, 0.0
        %v1897 = vadd.f32 %v1895, %v1896
        %v1898 = vsel %vm819, %v1874, 0.0
        %v1899 = vadd.f32 %v1897, %v1898
        %v1900 = vsel %vm819, %v1875, 0.0
        %v1901 = vadd.f32 %v1899, %v1900
        %v1902 = vsel %vm819, %v1876, 0.0
        %v1903 = vadd.f32 %v1901, %v1902
        %v1904 = vsel %vm819, %v1877, 0.0
        %v1905 = vadd.f32 %v1903, %v1904
        %v1906 = vsel %vm819, %v1878, 0.0
        %v1907 = vadd.f32 %v1905, %v1906
        %v1908 = vsel %vm819, %v1879, 0.0
        %v1909 = vadd.f32 %v1907, %v1908
        %v1910 = vsel %vm819, %v1880, 0.0
        %v1911 = vadd.f32 %v1909, %v1910
        %v1912 = vrot.slane %v1911, 4
        %v1913 = vadd.f32 %v1911, %v1912
        %v1914 = vrot.slane %v1913, 2
        %v1915 = vadd.f32 %v1913, %v1914
        %v1916 = vrot.slane %v1915, 1
        %v1917 = vadd.f32 %v1915, %v1916
        %v1918 = vadd.f32 %v1864, %v1917
        %1919 = vst.msk [vmem:[#allocation7] sm:$0x1] %vm1862, %v1918
        %p1920 = scmp.eq.s32.totalorder %s41, 1
        // Predicated region
        $region97: #{_lambda_.1} parent=63 // pred_check
          %p1921 = pneg %p1920
        $region98: #{_lambda_.1} parent=63 // pred_check_branch
          %1923 = sbr.rel (%p1921) target = $region100
        $region99: #{_lambda_.1} parent=63 // pred_region
          %s1924 = sld [smem:[#allocation20]]
          %s1925 = sld [smem:[#allocation20 + $0x1]]
          %v1926 = vld [vmem:[%s472] sm:$0xff]
          %v1927 = vld [vmem:[%s472 + $0x8] sm:$0xff]
          %v1928 = vld [vmem:[%s472 + $0x10] sm:$0xff]
          %v1929 = vld [vmem:[%s472 + $0x18] sm:$0xff]
          %v1930 = vld [vmem:[%s472 + $0x20] sm:$0xff]
          %v1931 = vld [vmem:[%s472 + $0x28] sm:$0xff]
          %v1932 = vld [vmem:[%s472 + $0x30] sm:$0xff]
          %v1933 = vld [vmem:[%s472 + $0x38] sm:$0xff]
          %v1934 = vld [vmem:[%s472 + $0x40] sm:$0xff]
          %v1935 = vld [vmem:[%s472 + $0x48] sm:$0xff]
          %v1936 = vld [vmem:[%s472 + $0x50] sm:$0xff]
          %v1937 = vld [vmem:[%s472 + $0x58] sm:$0xff]
          %v1938 = vld [vmem:[%s472 + $0x60] sm:$0xff]
          %v1939 = vld [vmem:[%s472 + $0x68] sm:$0xff]
          %v1940 = vld [vmem:[%s472 + $0x70] sm:$0xff]
          %v1941 = vld [vmem:[%s472 + $0x78] sm:$0xff]
          %v1942 = vld [vmem:[#allocation6] sm:$0x1]
          %v1943 = vrcp.pop 256.0
          %v1944 = vmul.f32 %v1942, %v1943
          %v1945 = vld [vmem:[#allocation7] sm:$0x1]
          %v1946 = vmul.f32 %v1944, 256.0
          %v1947 = vmul.f32 %v1946, %v1944
          %v1948 = vsub.f32 %v1945, %v1947
          %v1949 = vrcp.pop 255.0
          %v1950 = vmul.f32 %v1948, %v1949
          %v1951 = vmax.f32 %v1950, 0.0
          %v1952 = vrsqrt.pop %v1951
          %v1953 = vmul.f32 %v1951, %v1952
          %vm1954 = vcmp.eq.f32.partialorder %v1951, inf
          %v1955 = vsel %vm1954, %v1951, %v1953
          %vm1956 = vcmp.eq.f32.partialorder %v1951, 0.0
          %v1957 = vand.u32 %v1951, 2147483648
          %v1958 = vsel %vm1956, %v1957, %v1955
          %v1959 = vld [vmem:[#allocation18] sm:$0xff]
          %v1960 = vld [vmem:[#allocation18 + $0x8] sm:$0xff]
          %v1961 = vld [vmem:[#allocation18 + $0x10] sm:$0xff]
          %v1962 = vld [vmem:[#allocation18 + $0x18] sm:$0xff]
          %v1963 = vld [vmem:[#allocation18 + $0x20] sm:$0xff]
          %v1964 = vld [vmem:[#allocation18 + $0x28] sm:$0xff]
          %v1965 = vld [vmem:[#allocation18 + $0x30] sm:$0xff]
          %v1966 = vld [vmem:[#allocation18 + $0x38] sm:$0xff]
          %v1968 = vsel %vm819, %v1958, 0
          %1970 = vmatprep.subr.mxu0 0.0
          %1971 = vmatpush1.msra.mxu0 %v1963
          %1972 = vmatprep.subr.mxu0 0.0
          %1973 = vmatpush1.msra.mxu0 %v1964
          %1974 = vmatprep.subr.mxu0 0.0
          %1975 = vmatpush1.msra.mxu0 %v1965
          %1976 = vmatprep.subr.mxu0 0.0
          %1977 = vmatpush1.msra.mxu0 %v1966
          %1978 = vmatprep.subr.mxu0 0.0
          %1979 = vmatpush1.msra.mxu0 0.0
          %1980 = vmatprep.subr.mxu0 0.0
          %1981 = vmatpush1.msra.mxu0 0.0
          %1982 = vmatprep.subr.mxu0 0.0
          %1983 = vmatpush1.msra.mxu0 0.0
          %1984 = vmatprep.subr.mxu0 0.0
          %1985 = vmatpush1.msra.mxu0 0.0
          %1986 = vmatprep.subr.mxu0 0.0
          %1987 = vmatpush1.msra.mxu0 0.0
          %1988 = vmatprep.subr.mxu0 0.0
          %1989 = vmatpush1.msra.mxu0 0.0
          %1990 = vmatprep.subr.mxu0 0.0
          %1991 = vmatpush1.msra.mxu0 0.0
          %1992 = vmatprep.subr.mxu0 0.0
          %1993 = vmatpush1.msra.mxu0 0.0
          %1994 = vmatprep.subr.mxu0 0.0
          %1995 = vmatpush1.msra.mxu0 0.0
          %1996 = vmatprep.subr.mxu0 0.0
          %1997 = vmatpush1.msra.mxu0 0.0
          %1998 = vmatprep.subr.mxu0 0.0
          %1999 = vmatpush1.msra.mxu0 0.0
          %2000 = vmatprep.subr.mxu0 0.0
          %2001 = vmatpush1.msra.mxu0 0.0
          %2002 = vmatprep.subr.mxu0 0.0
          %2003 = vmatpush1.msra.mxu0 0.0
          %2004 = vmatprep.subr.mxu0 0.0
          %2005 = vmatpush1.msra.mxu0 0.0
          %2006 = vmatprep.subr.mxu0 0.0
          %2007 = vmatpush1.msra.mxu0 0.0
          %2008 = vmatprep.subr.mxu0 0.0
          %2009 = vmatpush1.msra.mxu0 0.0
          %2010 = vmatprep.subr.mxu0 0.0
          %2011 = vmatpush1.msra.mxu0 0.0
          %2012 = vmatprep.subr.mxu0 0.0
          %2013 = vmatpush1.msra.mxu0 0.0
          %2014 = vmatprep.subr.mxu0 0.0
          %2015 = vmatpush1.msra.mxu0 0.0
          %2016 = vmatprep.subr.mxu0 0.0
          %2017 = vmatpush1.msra.mxu0 0.0
          %2018 = vmatprep.subr.mxu0 0.0
          %2019 = vmatpush1.msra.mxu0 0.0
          %2020 = vmatprep.subr.mxu0 0.0
          %2021 = vmatpush1.msra.mxu0 0.0
          %2022 = vmatprep.subr.mxu0 0.0
          %2023 = vmatpush1.msra.mxu0 0.0
          %2024 = vmatprep.subr.mxu0 0.0
          %2025 = vmatpush1.msra.mxu0 0.0
          %2026 = vmatprep.subr.mxu0 0.0
          %2027 = vmatpush1.msra.mxu0 0.0
          %2028 = vmatprep.subr.mxu0 0.0
          %2029 = vmatpush1.msra.mxu0 0.0
          %2030 = vmatprep.subr.mxu0 0.0
          %2031 = vmatpush1.msra.mxu0 0.0
          %2032 = vmatprep.subr.mxu0 0.0
          %2033 = vmatpush1.msra.mxu0 0.0
          %2034 = vmatprep.mubr.f32.mxu0 0.0
          %2035 = vmatmul.mubr.f32.gmra.mrb[0].mxu0 %v1968
          %v2036 = vpop.f32.mrb[0].mxu0
          %v2037 = vadd.f32 0.0, %v2036
          %v2038 = vpop.f32.mrb[0].mxu0
          %2039 = vdwg.mxu0
          %v2041 = vsel %vm819, %v1944, 0
          %2043 = vmatprep.subr.mxu0 0.0
          %2044 = vmatpush1.msra.mxu0 %v1959
          %2045 = vmatprep.subr.mxu0 0.0
          %2046 = vmatpush1.msra.mxu0 %v1960
          %2047 = vmatprep.subr.mxu0 0.0
          %2048 = vmatpush1.msra.mxu0 %v1961
          %2049 = vmatprep.subr.mxu0 0.0
          %2050 = vmatpush1.msra.mxu0 %v1962
          %2051 = vmatprep.subr.mxu0 0.0
          %2052 = vmatpush1.msra.mxu0 0.0
          %2053 = vmatprep.subr.mxu0 0.0
          %2054 = vmatpush1.msra.mxu0 0.0
          %2055 = vmatprep.subr.mxu0 0.0
          %2056 = vmatpush1.msra.mxu0 0.0
          %2057 = vmatprep.subr.mxu0 0.0
          %2058 = vmatpush1.msra.mxu0 0.0
          %2059 = vmatprep.subr.mxu0 0.0
          %2060 = vmatpush1.msra.mxu0 0.0
          %2061 = vmatprep.subr.mxu0 0.0
          %2062 = vmatpush1.msra.mxu0 0.0
          %2063 = vmatprep.subr.mxu0 0.0
          %2064 = vmatpush1.msra.mxu0 0.0
          %2065 = vmatprep.subr.mxu0 0.0
          %2066 = vmatpush1.msra.mxu0 0.0
          %2067 = vmatprep.subr.mxu0 0.0
          %2068 = vmatpush1.msra.mxu0 0.0
          %2069 = vmatprep.subr.mxu0 0.0
          %2070 = vmatpush1.msra.mxu0 0.0
          %2071 = vmatprep.subr.mxu0 0.0
          %2072 = vmatpush1.msra.mxu0 0.0
          %2073 = vmatprep.subr.mxu0 0.0
          %2074 = vmatpush1.msra.mxu0 0.0
          %2075 = vmatprep.subr.mxu0 0.0
          %2076 = vmatpush1.msra.mxu0 0.0
          %2077 = vmatprep.subr.mxu0 0.0
          %2078 = vmatpush1.msra.mxu0 0.0
          %2079 = vmatprep.subr.mxu0 0.0
          %2080 = vmatpush1.msra.mxu0 0.0
          %2081 = vmatprep.subr.mxu0 0.0
          %2082 = vmatpush1.msra.mxu0 0.0
          %2083 = vmatprep.subr.mxu0 0.0
          %2084 = vmatpush1.msra.mxu0 0.0
          %2085 = vmatprep.subr.mxu0 0.0
          %2086 = vmatpush1.msra.mxu0 0.0
          %2087 = vmatprep.subr.mxu0 0.0
          %2088 = vmatpush1.msra.mxu0 0.0
          %2089 = vmatprep.subr.mxu0 0.0
          %2090 = vmatpush1.msra.mxu0 0.0
          %2091 = vmatprep.subr.mxu0 0.0
          %2092 = vmatpush1.msra.mxu0 0.0
          %2093 = vmatprep.subr.mxu0 0.0
          %2094 = vmatpush1.msra.mxu0 0.0
          %2095 = vmatprep.subr.mxu0 0.0
          %2096 = vmatpush1.msra.mxu0 0.0
          %2097 = vmatprep.subr.mxu0 0.0
          %2098 = vmatpush1.msra.mxu0 0.0
          %2099 = vmatprep.subr.mxu0 0.0
          %2100 = vmatpush1.msra.mxu0 0.0
          %2101 = vmatprep.subr.mxu0 0.0
          %2102 = vmatpush1.msra.mxu0 0.0
          %2103 = vmatprep.subr.mxu0 0.0
          %2104 = vmatpush1.msra.mxu0 0.0
          %2105 = vmatprep.subr.mxu0 0.0
          %2106 = vmatpush1.msra.mxu0 0.0
          %2107 = vmatprep.mubr.f32.mxu0 0.0
          %2108 = vmatmul.mubr.f32.gmra.mrb[0].mxu0 %v2041
          %v2109 = vpop.f32.mrb[0].mxu0
          %v2110 = vadd.f32 %v2037, %v2109
          %v2111 = vpop.f32.mrb[0].mxu0
          %2112 = vdwg.mxu0
          %v2113 = vmax.f32 %v2110, 0.0
          %v2114 = vld [vmem:[%s9] sm:$0xf]
          %v2116 = vsel %vm1067, %v2113, 0
          %vm2118 = vcmask 1043456
          %v2120 = vsel %vm2118, %v2114, 0
          %2122 = vmatprep.subr.mxu0 0.0
          %2123 = vmatpush1.msra.mxu0 %v2120
          %2124 = vmatprep.subr.mxu0 0.0
          %2125 = vmatpush1.msra.mxu0 0.0
          %2126 = vmatprep.subr.mxu0 0.0
          %2127 = vmatpush1.msra.mxu0 0.0
          %2128 = vmatprep.subr.mxu0 0.0
          %2129 = vmatpush1.msra.mxu0 0.0
          %2130 = vmatprep.subr.mxu0 0.0
          %2131 = vmatpush1.msra.mxu0 0.0
          %2132 = vmatprep.subr.mxu0 0.0
          %2133 = vmatpush1.msra.mxu0 0.0
          %2134 = vmatprep.subr.mxu0 0.0
          %2135 = vmatpush1.msra.mxu0 0.0
          %2136 = vmatprep.subr.mxu0 0.0
          %2137 = vmatpush1.msra.mxu0 0.0
          %2138 = vmatprep.subr.mxu0 0.0
          %2139 = vmatpush1.msra.mxu0 0.0
          %2140 = vmatprep.subr.mxu0 0.0
          %2141 = vmatpush1.msra.mxu0 0.0
          %2142 = vmatprep.subr.mxu0 0.0
          %2143 = vmatpush1.msra.mxu0 0.0
          %2144 = vmatprep.subr.mxu0 0.0
          %2145 = vmatpush1.msra.mxu0 0.0
          %2146 = vmatprep.subr.mxu0 0.0
          %2147 = vmatpush1.msra.mxu0 0.0
          %2148 = vmatprep.subr.mxu0 0.0
          %2149 = vmatpush1.msra.mxu0 0.0
          %2150 = vmatprep.subr.mxu0 0.0
          %2151 = vmatpush1.msra.mxu0 0.0
          %2152 = vmatprep.subr.mxu0 0.0
          %2153 = vmatpush1.msra.mxu0 0.0
          %2154 = vmatprep.subr.mxu0 0.0
          %2155 = vmatpush1.msra.mxu0 0.0
          %2156 = vmatprep.subr.mxu0 0.0
          %2157 = vmatpush1.msra.mxu0 0.0
          %2158 = vmatprep.subr.mxu0 0.0
          %2159 = vmatpush1.msra.mxu0 0.0
          %2160 = vmatprep.subr.mxu0 0.0
          %2161 = vmatpush1.msra.mxu0 0.0
          %2162 = vmatprep.subr.mxu0 0.0
          %2163 = vmatpush1.msra.mxu0 0.0
          %2164 = vmatprep.subr.mxu0 0.0
          %2165 = vmatpush1.msra.mxu0 0.0
          %2166 = vmatprep.subr.mxu0 0.0
          %2167 = vmatpush1.msra.mxu0 0.0
          %2168 = vmatprep.subr.mxu0 0.0
          %2169 = vmatpush1.msra.mxu0 0.0
          %2170 = vmatprep.subr.mxu0 0.0
          %2171 = vmatpush1.msra.mxu0 0.0
          %2172 = vmatprep.subr.mxu0 0.0
          %2173 = vmatpush1.msra.mxu0 0.0
          %2174 = vmatprep.subr.mxu0 0.0
          %2175 = vmatpush1.msra.mxu0 0.0
          %2176 = vmatprep.subr.mxu0 0.0
          %2177 = vmatpush1.msra.mxu0 0.0
          %2178 = vmatprep.subr.mxu0 0.0
          %2179 = vmatpush1.msra.mxu0 0.0
          %2180 = vmatprep.subr.mxu0 0.0
          %2181 = vmatpush1.msra.mxu0 0.0
          %2182 = vmatprep.subr.mxu0 0.0
          %2183 = vmatpush1.msra.mxu0 0.0
          %2184 = vmatprep.subr.mxu0 0.0
          %2185 = vmatpush1.msra.mxu0 0.0
          %2186 = vmatprep.mubr.f32.mxu0 0.0
          %2187 = vmatmul.mubr.f32.gmra.mrb[0].mxu0 %v2116
          %v2188 = vpop.f32.mrb[0].mxu0
          %v2189 = vadd.f32 0.0, %v2188
          %v2190 = vpop.f32.mrb[0].mxu0
          %2191 = vdwg.mxu0
          %v2192 = vxor.u32 %v2189, 2147483648
          %v2193 = vmul.f32 %v2192, 1.442695
          %v2194 = vpow.pop %v2193
          %v2195 = vadd.f32 %v2194, 1.0
          %v2196 = vrcp.pop %v2195
          %v2197 = vmul.f32 1.0, %v2196
          %v2198 = vld [vmem:[#allocation4] sm:$0xff]
          %v2199 = vld [vmem:[#allocation4 + $0x8] sm:$0xff]
          %v2200 = vld [vmem:[#allocation4 + $0x10] sm:$0xff]
          %v2201 = vld [vmem:[#allocation4 + $0x18] sm:$0xff]
          %v2202 = vld [vmem:[#allocation4 + $0x20] sm:$0xff]
          %v2203 = vld [vmem:[#allocation4 + $0x28] sm:$0xff]
          %v2204 = vld [vmem:[#allocation4 + $0x30] sm:$0xff]
          %v2205 = vld [vmem:[#allocation4 + $0x38] sm:$0xff]
          %v2206 = vld [vmem:[#allocation4 + $0x40] sm:$0xff]
          %v2207 = vld [vmem:[#allocation4 + $0x48] sm:$0xff]
          %v2208 = vld [vmem:[#allocation4 + $0x50] sm:$0xff]
          %v2209 = vld [vmem:[#allocation4 + $0x58] sm:$0xff]
          %v2210 = vld [vmem:[#allocation4 + $0x60] sm:$0xff]
          %v2211 = vld [vmem:[#allocation4 + $0x68] sm:$0xff]
          %v2212 = vld [vmem:[#allocation4 + $0x70] sm:$0xff]
          %v2213 = vld [vmem:[#allocation4 + $0x78] sm:$0xff]
          %v2214 = vrcp.pop %v2198
          %v2215 = vrcp.pop %v2199
          %v2216 = vrcp.pop %v2200
          %v2217 = vrcp.pop %v2201
          %v2218 = vrcp.pop %v2202
          %v2219 = vrcp.pop %v2203
          %v2220 = vrcp.pop %v2204
          %v2221 = vrcp.pop %v2205
          %v2222 = vrcp.pop %v2206
          %v2223 = vrcp.pop %v2207
          %v2224 = vrcp.pop %v2208
          %v2225 = vrcp.pop %v2209
          %v2226 = vrcp.pop %v2210
          %v2227 = vrcp.pop %v2211
          %v2228 = vrcp.pop %v2212
          %v2229 = vrcp.pop %v2213
          %v2230 = vld [vmem:[#allocation5] sm:$0xff]
          %v2231 = vld [vmem:[#allocation5 + $0x8] sm:$0xff]
          %v2232 = vld [vmem:[#allocation5 + $0x10] sm:$0xff]
          %v2233 = vld [vmem:[#allocation5 + $0x18] sm:$0xff]
          %v2234 = vld [vmem:[#allocation5 + $0x20] sm:$0xff]
          %v2235 = vld [vmem:[#allocation5 + $0x28] sm:$0xff]
          %v2236 = vld [vmem:[#allocation5 + $0x30] sm:$0xff]
          %v2237 = vld [vmem:[#allocation5 + $0x38] sm:$0xff]
          %v2238 = vld [vmem:[#allocation5 + $0x40] sm:$0xff]
          %v2239 = vld [vmem:[#allocation5 + $0x48] sm:$0xff]
          %v2240 = vld [vmem:[#allocation5 + $0x50] sm:$0xff]
          %v2241 = vld [vmem:[#allocation5 + $0x58] sm:$0xff]
          %v2242 = vld [vmem:[#allocation5 + $0x60] sm:$0xff]
          %v2243 = vld [vmem:[#allocation5 + $0x68] sm:$0xff]
          %v2244 = vld [vmem:[#allocation5 + $0x70] sm:$0xff]
          %v2245 = vld [vmem:[#allocation5 + $0x78] sm:$0xff]
          %2247 = vset.pattern.permute.xlu0 0
          %2248 = vperm.xlu0 %2247, %v2214
          %v2249 = vpop.permute.xlu0 %2248
          %2252 = vset.pattern.permute.xlu0 0
          %2253 = vperm.xlu0 %2252, %v2215
          %v2254 = vpop.permute.xlu0 %2253
          %2257 = vset.pattern.permute.xlu0 0
          %2258 = vperm.xlu0 %2257, %v2216
          %v2259 = vpop.permute.xlu0 %2258
          %2262 = vset.pattern.permute.xlu0 0
          %2263 = vperm.xlu0 %2262, %v2217
          %v2264 = vpop.permute.xlu0 %2263
          %2267 = vset.pattern.permute.xlu0 0
          %2268 = vperm.xlu0 %2267, %v2218
          %v2269 = vpop.permute.xlu0 %2268
          %2272 = vset.pattern.permute.xlu0 0
          %2273 = vperm.xlu0 %2272, %v2219
          %v2274 = vpop.permute.xlu0 %2273
          %2277 = vset.pattern.permute.xlu0 0
          %2278 = vperm.xlu0 %2277, %v2220
          %v2279 = vpop.permute.xlu0 %2278
          %2282 = vset.pattern.permute.xlu0 0
          %2283 = vperm.xlu0 %2282, %v2221
          %v2284 = vpop.permute.xlu0 %2283
          %2287 = vset.pattern.permute.xlu0 0
          %2288 = vperm.xlu0 %2287, %v2222
          %v2289 = vpop.permute.xlu0 %2288
          %2292 = vset.pattern.permute.xlu0 0
          %2293 = vperm.xlu0 %2292, %v2223
          %v2294 = vpop.permute.xlu0 %2293
          %2297 = vset.pattern.permute.xlu0 0
          %2298 = vperm.xlu0 %2297, %v2224
          %v2299 = vpop.permute.xlu0 %2298
          %2302 = vset.pattern.permute.xlu0 0
          %2303 = vperm.xlu0 %2302, %v2225
          %v2304 = vpop.permute.xlu0 %2303
          %2307 = vset.pattern.permute.xlu0 0
          %2308 = vperm.xlu0 %2307, %v2226
          %v2309 = vpop.permute.xlu0 %2308
          %2312 = vset.pattern.permute.xlu0 0
          %2313 = vperm.xlu0 %2312, %v2227
          %v2314 = vpop.permute.xlu0 %2313
          %2317 = vset.pattern.permute.xlu0 0
          %2318 = vperm.xlu0 %2317, %v2228
          %v2319 = vpop.permute.xlu0 %2318
          %2322 = vset.pattern.permute.xlu0 0
          %2323 = vperm.xlu0 %2322, %v2229
          %v2324 = vpop.permute.xlu0 %2323
          %v2326 = vmul.f32 %v2230, %v2249
          %v2327 = vmul.f32 %v2231, %v2254
          %v2328 = vmul.f32 %v2232, %v2259
          %v2329 = vmul.f32 %v2233, %v2264
          %v2330 = vmul.f32 %v2234, %v2269
          %v2331 = vmul.f32 %v2235, %v2274
          %v2332 = vmul.f32 %v2236, %v2279
          %v2333 = vmul.f32 %v2237, %v2284
          %v2334 = vmul.f32 %v2238, %v2289
          %v2335 = vmul.f32 %v2239, %v2294
          %v2336 = vmul.f32 %v2240, %v2299
          %v2337 = vmul.f32 %v2241, %v2304
          %v2338 = vmul.f32 %v2242, %v2309
          %v2339 = vmul.f32 %v2243, %v2314
          %v2340 = vmul.f32 %v2244, %v2319
          %v2341 = vmul.f32 %v2245, %v2324
          %v2342 = vstv %s1924
          %v2343 = vmul.f32 %v2342, %v2326
          %v2344 = vmul.f32 %v2342, %v2327
          %v2345 = vmul.f32 %v2342, %v2328
          %v2346 = vmul.f32 %v2342, %v2329
          %v2347 = vmul.f32 %v2342, %v2330
          %v2348 = vmul.f32 %v2342, %v2331
          %v2349 = vmul.f32 %v2342, %v2332
          %v2350 = vmul.f32 %v2342, %v2333
          %v2351 = vmul.f32 %v2342, %v2334
          %v2352 = vmul.f32 %v2342, %v2335
          %v2353 = vmul.f32 %v2342, %v2336
          %v2354 = vmul.f32 %v2342, %v2337
          %v2355 = vmul.f32 %v2342, %v2338
          %v2356 = vmul.f32 %v2342, %v2339
          %v2357 = vmul.f32 %v2342, %v2340
          %v2358 = vmul.f32 %v2342, %v2341
          %v2359 = vstv %s1925
          %v2360 = vmul.f32 %v2359, %v2197
          %v2361 = vlaneseq
          %v2362 = vshrl.u32 %v2361, 7
          %v2363 = vsub.s32 0, %v2362
          %v2364 = vrot.slane %v2360, %v2363
          %v2365 = vmul.f32 %v2364, %v1926
          %v2366 = vmul.f32 %v2364, %v1927
          %v2367 = vmul.f32 %v2364, %v1928
          %v2368 = vmul.f32 %v2364, %v1929
          %v2369 = vmul.f32 %v2364, %v1930
          %v2370 = vmul.f32 %v2364, %v1931
          %v2371 = vmul.f32 %v2364, %v1932
          %v2372 = vmul.f32 %v2364, %v1933
          %v2373 = vmul.f32 %v2364, %v1934
          %v2374 = vmul.f32 %v2364, %v1935
          %v2375 = vmul.f32 %v2364, %v1936
          %v2376 = vmul.f32 %v2364, %v1937
          %v2377 = vmul.f32 %v2364, %v1938
          %v2378 = vmul.f32 %v2364, %v1939
          %v2379 = vmul.f32 %v2364, %v1940
          %v2380 = vmul.f32 %v2364, %v1941
          %v2381 = vadd.f32 %v2343, %v2365
          %v2382 = vadd.f32 %v2344, %v2366
          %v2383 = vadd.f32 %v2345, %v2367
          %v2384 = vadd.f32 %v2346, %v2368
          %v2385 = vadd.f32 %v2347, %v2369
          %v2386 = vadd.f32 %v2348, %v2370
          %v2387 = vadd.f32 %v2349, %v2371
          %v2388 = vadd.f32 %v2350, %v2372
          %v2389 = vadd.f32 %v2351, %v2373
          %v2390 = vadd.f32 %v2352, %v2374
          %v2391 = vadd.f32 %v2353, %v2375
          %v2392 = vadd.f32 %v2354, %v2376
          %v2393 = vadd.f32 %v2355, %v2377
          %v2394 = vadd.f32 %v2356, %v2378
          %v2395 = vadd.f32 %v2357, %v2379
          %v2396 = vadd.f32 %v2358, %v2380
          %v2397 = vadd.f32 %v2381, %v1926
          %v2398 = vadd.f32 %v2382, %v1927
          %v2399 = vadd.f32 %v2383, %v1928
          %v2400 = vadd.f32 %v2384, %v1929
          %v2401 = vadd.f32 %v2385, %v1930
          %v2402 = vadd.f32 %v2386, %v1931
          %v2403 = vadd.f32 %v2387, %v1932
          %v2404 = vadd.f32 %v2388, %v1933
          %v2405 = vadd.f32 %v2389, %v1934
          %v2406 = vadd.f32 %v2390, %v1935
          %v2407 = vadd.f32 %v2391, %v1936
          %v2408 = vadd.f32 %v2392, %v1937
          %v2409 = vadd.f32 %v2393, %v1938
          %v2410 = vadd.f32 %v2394, %v1939
          %v2411 = vadd.f32 %v2395, %v1940
          %v2412 = vadd.f32 %v2396, %v1941
          %2413 = vst.msk [vmem:[%s545] sm:$0xff] %vm819, %v2397
          %2414 = vst.msk [vmem:[%s545 + $0x8] sm:$0xff] %vm819, %v2398
          %2415 = vst.msk [vmem:[%s545 + $0x10] sm:$0xff] %vm819, %v2399
          %2416 = vst.msk [vmem:[%s545 + $0x18] sm:$0xff] %vm819, %v2400
          %2417 = vst.msk [vmem:[%s545 + $0x20] sm:$0xff] %vm819, %v2401
          %2418 = vst.msk [vmem:[%s545 + $0x28] sm:$0xff] %vm819, %v2402
          %2419 = vst.msk [vmem:[%s545 + $0x30] sm:$0xff] %vm819, %v2403
          %2420 = vst.msk [vmem:[%s545 + $0x38] sm:$0xff] %vm819, %v2404
          %2421 = vst.msk [vmem:[%s545 + $0x40] sm:$0xff] %vm819, %v2405
          %2422 = vst.msk [vmem:[%s545 + $0x48] sm:$0xff] %vm819, %v2406
          %2423 = vst.msk [vmem:[%s545 + $0x50] sm:$0xff] %vm819, %v2407
          %2424 = vst.msk [vmem:[%s545 + $0x58] sm:$0xff] %vm819, %v2408
          %2425 = vst.msk [vmem:[%s545 + $0x60] sm:$0xff] %vm819, %v2409
          %2426 = vst.msk [vmem:[%s545 + $0x68] sm:$0xff] %vm819, %v2410
          %2427 = vst.msk [vmem:[%s545 + $0x70] sm:$0xff] %vm819, %v2411
          %2428 = vst.msk [vmem:[%s545 + $0x78] sm:$0xff] %vm819, %v2412
        $region100: #{_lambda_.1} parent=63 // pred_fallthru
          _
        %s2429 = sand.u32 %s308, 1
        %s2430 = scalar_lea.sflag [#allocation10], %s2429
        %s2431 = sand.u32 %s308, 1
        %s2432 = smul.addr %s2431, 128
        %s2433 = scalar_lea.vmem [#allocation21], %s2432
        // Predicated region
        $region101: #{_lambda_.1} parent=63 // pred_check
          %p2434 = pneg %p318
        $region102: #{_lambda_.1} parent=63 // pred_check_branch
          %2436 = sbr.rel (%p2434) target = $region104
        $region103: #{_lambda_.1} parent=63 // pred_region
          %s2437 = smul.u32 16, %s40
          %s2439 = ssub.s32 2048, 2048
          %2440 = vsyncadd %s2430, %s2439
          %s2441 = smul.addr %s39, 32
          %s2442 = sadd.s32 %s2437, %s2441
          %s2443 = smul.addr %s2442, 128
          %s2444 = scalar_lea.hbm %s11, %s2443
          %s2445 = sshll.u32 %s2433, 4
          %s2446 = int_to_ptr.vmem [resolvable:$true] %s2445
          %2451 = dma.vmem_to_hbm [thread:$0]  %s2446, 2048, %s2444, %s2430, 128, 128, 8
        $region104: #{_lambda_.1} parent=63 // pred_fallthru
          _
      $region64: #{_lambda_.1} parent=5 // pred_fallthru
        _
      %p2452 = scmp.le.s32.totalorder 2, %s29
      // Predicated region
      $region105: #{_lambda_.1} parent=5 // pred_check
        %p2453 = pneg %p2452
      $region106: #{_lambda_.1} parent=5 // pred_check_branch
        %2455 = sbr.rel (%p2453) target = $region108
      $region107: #{_lambda_.1} parent=5 // pred_region
        %s2456 = ssub.s32 %s29, 2
        // Predicated region
        $region109: #{_lambda_.1} parent=107 // pred_check
          %p2457 = pneg %p324
        $region110: #{_lambda_.1} parent=107 // pred_check_branch
          %2459 = sbr.rel (%p2457) target = $region112
        $region111: #{_lambda_.1} parent=107 // pred_region
          %s2460 = sand.u32 %s309, 1
          %s2461 = scalar_lea.sflag [#allocation10], %s2460
          %s2462 = sand.u32 %s309, 1
          %s2463 = smul.addr %s2462, 128
          %s2464 = scalar_lea.vmem [#allocation21], %s2463
          %2465 = dma.done %s2461, 2048
        $region112: #{_lambda_.1} parent=107 // pred_fallthru
          _
      $region108: #{_lambda_.1} parent=5 // pred_fallthru
        _
    $region6: #{_lambda_.1} parent=1 // loop_footer
      %s33 = sadd.s32 1, %s29
    $region7: #{_lambda_.1} parent=1 // loop_footer_branch
      %28 = sbr.rel target = $region3
    $region8: #{_lambda_.1} parent=1 // loop_exit
      _
    %2466 = vsyncpa [#allocation9], 1
    %s2467 = scalar_lea.sflag [#allocation9], 1
    %2468 = vsyncpa %s2467, 1
    %2469 = vsyncpa [#allocation13], 1
    %s2470 = scalar_lea.sflag [#allocation13], 1
    %2471 = vsyncpa %s2470, 1
    %2472 = vsyncpa [#allocation16], 1
    %2473 = vsyncpa [#allocation19], 1
    %2474 = vsyncpa [#allocation10], 1
    %s2475 = scalar_lea.sflag [#allocation10], 1
    %2476 = vsyncpa %s2475, 1
    %2477 = vsyncpa [#allocation11], 1
    %s2478 = scalar_lea.sflag [#allocation11], 1
    %2479 = vsyncpa %s2478, 1

</llo_original>
